<compile_context>
chip_gen: v7x
topology: tpu7x:2x2x1
jax: 0.10.0
libtpu: 0.0.40
codegen_flags: <defaults>
</compile_context>

<pallas_src>
import functools
import math

import jax
import jax.numpy as jnp
from jax import lax
from jax.experimental import pallas as pl
from jax.experimental.pallas import tpu as pltpu

CFG = dict(
    vocab_size=256,
    context_length=8,
    emb_dim=32,
    n_heads=4,
    n_layers=2,
    drop_rate=0.0,   # dropout is identity in this forward
    qkv_bias=False,
)

EPS = 1e-5
NEG_INF = -1e30
_GELU_C = math.sqrt(2.0 / math.pi)


# ----------------------------- shared math helpers -----------------------------
def _gelu(x):
    return 0.5 * x * (1.0 + jnp.tanh(_GELU_C * (x + 0.044715 * x ** 3)))


def _ln_kernel(x, scale, shift):
    """In-kernel LayerNorm matching the PyTorch module:
    (x - mean) / (sqrt(var) + eps), unbiased=False.  Divide -> EUP reciprocal."""
    mean = jnp.mean(x, axis=-1, keepdims=True)
    var = jnp.mean((x - mean) ** 2, axis=-1, keepdims=True)
    inv = pl.reciprocal(jnp.sqrt(var) + EPS, approx=True)
    return scale * ((x - mean) * inv) + shift


def _mm(a, b):
    """(m,k) @ (k,n) -> f32 (m,n); bf16 MXU inputs, f32 accumulation.
    Weights are pre-cast to bf16 at pack time, so only activations pay a cast."""
    return jnp.dot(a.astype(jnp.bfloat16), b.astype(jnp.bfloat16),
                   preferred_element_type=jnp.float32)


def _mm_nt(a, b):
    """(m,k) x (n,k) -> f32 (m,n): A @ B^T without materializing a transpose."""
    return lax.dot_general(a.astype(jnp.bfloat16), b.astype(jnp.bfloat16),
                           (((1,), (1,)), ((), ())),
                           preferred_element_type=jnp.float32)


# ----------------------------- fused Pallas kernel -----------------------------
def gpt_fused_kernel(n_layers, n_heads, head_dim,
                     x_ref, mask_ref, vecs_ref, b1_ref,
                     wqkv_ref, wo_ref, w1_ref, w2_ref, wl_ref,
                     out_ref):
    """Whole forward for one batch-block: both transformer layers + final
    LayerNorm + logits head.  Residual stream and all weights stay in VMEM;
    only the lane-dense (Nb, vocab) logits tile is written back."""
    x = x_ref[...]                       # (Nb, D) residual stream, Nb = bb * T
    nb, d = x.shape
    mask = mask_ref[...]                 # (Nb, Nb) additive causal + batch mask

    for l in range(n_layers):            # n_layers = 2: fully unrolled
        base = 6 * l
        ln1s = vecs_ref[base + 0:base + 1]
        ln1b = vecs_ref[base + 1:base + 2]
        bo = vecs_ref[base + 2:base + 3]
        ln2s = vecs_ref[base + 3:base + 4]
        ln2b = vecs_ref[base + 4:base + 5]
        b2 = vecs_ref[base + 5:base + 6]

        # ---- multi-head causal self-attention ----
        h = _ln_kernel(x, ln1s, ln1b)
        qkv = _mm(h, wqkv_ref[l])        # fused QKV; Q already scaled 1/sqrt(hd)
        ctx_heads = []
        for hh in range(n_heads):
            lo, hi = hh * head_dim, (hh + 1) * head_dim
            q = qkv[:, lo:hi]
            k = qkv[:, d + lo:d + hi]
            v = qkv[:, 2 * d + lo:2 * d + hi]
            s = _mm_nt(q, k) + mask                         # (Nb, Nb)
            s = s - jnp.max(s, axis=-1, keepdims=True)
            p = jnp.exp(s)                                  # unnormalized probs
            denom = jnp.sum(p, axis=-1, keepdims=True)
            # defer normalization to the (Nb, hd) ctx; reciprocal on the EUP
            ctx = _mm(p, v) * pl.reciprocal(denom, approx=True)
            ctx_heads.append(ctx)
        ctx_all = jnp.concatenate(ctx_heads, axis=-1)       # (Nb, D)
        x = x + _mm(ctx_all, wo_ref[l]) + bo                # single out-proj matmul

        # ---- GELU feed-forward ----
        h2 = _ln_kernel(x, ln2s, ln2b)
        a = _gelu(_mm(h2, w1_ref[l]) + b1_ref[l:l + 1])
        x = x + _mm(a, w2_ref[l]) + b2                      # residual 2

    fns = vecs_ref[6 * n_layers + 0:6 * n_layers + 1]
    fnb = vecs_ref[6 * n_layers + 1:6 * n_layers + 2]
    h = _ln_kernel(x, fns, fnb)
    out_ref[...] = _mm(h, wl_ref[...])   # (Nb, V): V=256 lane-dense write


# ----------------------------- one-time setup (outside jit) -----------------------------
def build_additive_mask(batch_block, seq):
    """(bb*T, bb*T) additive mask: 0 where a query row may attend (same batch
    element AND key position <= query position), -1e30 elsewhere.  Encodes
    causality + batch block-diagonality so attention runs on flat 2-D tiles."""
    n = jnp.arange(batch_block * seq)
    b = n // seq
    t = n % seq
    ok = (b[:, None] == b[None, :]) & (t[None, :] <= t[:, None])
    return jnp.where(ok, 0.0, NEG_INF).astype(jnp.float32)


def pack_params(params, cfg):
    """Stack per-layer weights, pre-transpose to (in, out) layout, fold the
    1/sqrt(head_dim) attention scale into the Q weights, and pre-cast all
    matmul weights to bf16.  Runs ONCE at setup, not per forward call."""
    D = cfg['emb_dim']
    hd = D // cfg['n_heads']
    inv_sqrt_hd = 1.0 / math.sqrt(hd)

    vec_rows, b1_rows = [], []
    wqkv_l, wo_l, w1_l, w2_l = [], [], [], []
    for (ln1s, ln1b, wq, wk, wv, wo, bo, ln2s, ln2b, w1, b1, w2, b2) in params['layers']:
        vec_rows += [ln1s.reshape(-1), ln1b.reshape(-1), bo.reshape(-1),
                     ln2s.reshape(-1), ln2b.reshape(-1), b2.reshape(-1)]
        b1_rows.append(b1.reshape(-1))
        wqkv_l.append(jnp.concatenate([wq * inv_sqrt_hd, wk, wv], axis=0).T)  # (D, 3D)
        wo_l.append(wo.T)                                                     # (D, D)
        w1_l.append(w1.T)                                                     # (D, 4D)
        w2_l.append(w2.T)                                                     # (4D, D)
    vec_rows += [params['final_norm_scale'].reshape(-1),
                 params['final_norm_shift'].reshape(-1)]

    return dict(
        tok_emb=params['tok_emb'],
        pos_emb=params['pos_emb'],
        vecs=jnp.stack(vec_rows).astype(jnp.float32),      # (6L+2, D)
        b1=jnp.stack(b1_rows).astype(jnp.float32),         # (L, 4D)
        wqkv=jnp.stack(wqkv_l).astype(jnp.bfloat16),       # (L, D, 3D)
        wo=jnp.stack(wo_l).astype(jnp.bfloat16),           # (L, D, D)
        w1=jnp.stack(w1_l).astype(jnp.bfloat16),           # (L, D, 4D)
        w2=jnp.stack(w2_l).astype(jnp.bfloat16),           # (L, 4D, D)
        wl=params['w_logits'].T.astype(jnp.bfloat16),      # (D, V)
    )


def _pick_batch_block(batch, seq, max_rows=256):
    """Whole batch elements per grid block, targeting <=256 rows per block."""
    bb = max(1, min(batch, max_rows // max(seq, 1)))
    while batch % bb:
        bb -= 1
    if (bb * seq) % 8 != 0:      # keep sublane alignment; else one full block
        bb = batch
    return bb


def build_forward(params, cfg, batch, seq):
    """One-time setup: pack/pre-cast weights, build the mask, jit the forward."""
    D = cfg['emb_dim']
    H = cfg['n_heads']
    L = cfg['n_layers']
    V = cfg['vocab_size']
    hd = D // H

    bb = _pick_batch_block(batch, seq)
    nb = bb * seq                    # rows per grid block
    nblk = batch // bb               # grid size (parallel -> both TCs on v7x)

    packed = pack_params(params, cfg)
    packed['mask'] = build_additive_mask(bb, seq)

    kernel = functools.partial(gpt_fused_kernel, L, H, hd)
    n_vec_rows = 6 * L + 2

    in_specs = [
        pl.BlockSpec((nb, D), lambda i: (i, 0)),            # x (token block)
        pl.BlockSpec((nb, nb), lambda i: (0, 0)),           # mask
        pl.BlockSpec((n_vec_rows, D), lambda i: (0, 0)),    # LN scales/shifts/biases
        pl.BlockSpec((L, 4 * D), lambda i: (0, 0)),         # ffn b1
        pl.BlockSpec((L, D, 3 * D), lambda i: (0, 0, 0)),   # fused QKV weights
        pl.BlockSpec((L, D, D), lambda i: (0, 0, 0)),       # out-proj weights
        pl.BlockSpec((L, D, 4 * D), lambda i: (0, 0, 0)),   # ffn W1
        pl.BlockSpec((L, 4 * D, D), lambda i: (0, 0, 0)),   # ffn W2
        pl.BlockSpec((D, V), lambda i: (0, 0)),             # logits weights
    ]
    out_spec = pl.BlockSpec((nb, V), lambda i: (i, 0))

    @jax.jit
    def forward(packed, ids):
        # TODO(synk): nn.Embedding gathers stay in plain JAX; a Pallas DMA-gather
        # is not worthwhile at this size.
        tok = jnp.take(packed['tok_emb'], ids, axis=0)            # (B, T, D)
        x = (tok + packed['pos_emb'][None, :seq, :]).reshape(batch * seq, D)
        logits = pl.pallas_call(
            kernel,
            out_shape=jax.ShapeDtypeStruct((batch * seq, V), jnp.float32),
            grid=(nblk,),
            in_specs=in_specs,
            out_specs=out_spec,
            compiler_params=pltpu.CompilerParams(
                dimension_semantics=("parallel",)),
        )(x, packed['mask'], packed['vecs'], packed['b1'],
          packed['wqkv'], packed['wo'], packed['w1'], packed['w2'], packed['wl'])
        return logits.reshape(batch, seq, V)

    return forward, packed


# ----------------------------- parameter init (deterministic) -----------------------------
def init_params(cfg, key):
    D = cfg['emb_dim']
    V = cfg['vocab_size']
    C = cfg['context_length']
    n_layers = cfg['n_layers']

    def nrm(k, shape, s=0.02):
        return s * jax.random.normal(k, shape, dtype=jnp.float32)

    keys = jax.random.split(key, 3 + n_layers)
    params = {
        'tok_emb': nrm(keys[0], (V, D)),
        'pos_emb': nrm(keys[1], (C, D)),
        'final_norm_scale': jnp.ones((1, D), jnp.float32),
        'final_norm_shift': jnp.zeros((1, D), jnp.float32),
        'w_logits': nrm(keys[2], (V, D)),
        'layers': [],
    }
    for li in range(n_layers):
        lk = jax.random.split(keys[3 + li], 8)
        layer = (
            jnp.ones((1, D), jnp.float32),            # ln1 scale
            jnp.zeros((1, D), jnp.float32),           # ln1 shift
            nrm(lk[0], (D, D)),                       # W_query (out, in)
            nrm(lk[1], (D, D)),                       # W_key
            nrm(lk[2], (D, D)),                       # W_value
            nrm(lk[3], (D, D)),                       # out_proj W
            nrm(lk[4], (1, D)),                       # out_proj b
            jnp.ones((1, D), jnp.float32),            # ln2 scale
            jnp.zeros((1, D), jnp.float32),           # ln2 shift
            nrm(lk[5], (4 * D, D)),                   # ffn W1
            nrm(lk[6], (1, 4 * D)),                   # ffn b1
            nrm(lk[7], (D, 4 * D)),                   # ffn W2
            jnp.zeros((1, D), jnp.float32),           # ffn b2
        )
        params['layers'].append(layer)
    return params


# ----------------------------- pure-JAX reference (ground truth) -----------------------------
_PREC = lax.Precision.HIGHEST  # reference only


def _ln_ref(x, scale, shift):
    mean = jnp.mean(x, axis=-1, keepdims=True)
    var = jnp.mean((x - mean) ** 2, axis=-1, keepdims=True)
    return scale * ((x - mean) / (jnp.sqrt(var) + EPS)) + shift


def gpt_reference(params, ids, cfg):
    D = cfg['emb_dim']
    H = cfg['n_heads']
    hd = D // H
    B, T = ids.shape

    x = jnp.take(params['tok_emb'], ids, axis=0) + params['pos_emb'][:T][None]
    row = lax.broadcasted_iota(jnp.int32, (T, T), 0)
    col = lax.broadcasted_iota(jnp.int32, (T, T), 1)
    causal = col > row

    for (ln1s, ln1b, wq, wk, wv, wo, bo, ln2s, ln2b, w1, b1, w2, b2) in params['layers']:
        h = _ln_ref(x, ln1s, ln1b)
        q = jnp.einsum('btd,od->bto', h, wq, precision=_PREC)
        k = jnp.einsum('btd,od->bto', h, wk, precision=_PREC)
        v = jnp.einsum('btd,od->bto', h, wv, precision=_PREC)
        q = q.reshape(B, T, H, hd).transpose(0, 2, 1, 3)
        k = k.reshape(B, T, H, hd).transpose(0, 2, 1, 3)
        v = v.reshape(B, T, H, hd).transpose(0, 2, 1, 3)
        s = jnp.einsum('bhti,bhsi->bhts', q, k, precision=_PREC)
        s = jnp.where(causal, -jnp.inf, s) / (hd ** 0.5)
        p = jax.nn.softmax(s, axis=-1)
        ctx = jnp.einsum('bhts,bhsi->bhti', p, v, precision=_PREC)
        ctx = ctx.transpose(0, 2, 1, 3).reshape(B, T, D)
        attn = jnp.einsum('btd,od->bto', ctx, wo, precision=_PREC) + bo
        x = x + attn
        h2 = _ln_ref(x, ln2s, ln2b)
        a = _gelu(jnp.einsum('btd,fd->btf', h2, w1, precision=_PREC) + b1)
        x = x + jnp.einsum('btf,df->btd', a, w2, precision=_PREC) + b2
    h = _ln_ref(x, params['final_norm_scale'], params['final_norm_shift'])
    return jnp.einsum('btd,vd->btv', h, params['w_logits'], precision=_PREC)


# ----------------------------- main -----------------------------
if __name__ == "__main__":
    key = jax.random.PRNGKey(0)
    pkey, dkey = jax.random.split(key)

    params = init_params(CFG, pkey)

    B, T = 2, CFG['context_length']
    ids = jax.random.randint(dkey, (B, T), 0, CFG['vocab_size'], dtype=jnp.int32)

    # One-time setup (weight packing / bf16 cast / mask build / jit), then run.
    forward, packed = build_forward(params, CFG, B, T)
    logits = jax.block_until_ready(forward(packed, ids))
    ref = jax.block_until_ready(gpt_reference(params, ids, CFG))

    assert logits.shape == (B, T, CFG['vocab_size'])
    assert jnp.allclose(logits, ref, atol=2e-2, rtol=2e-2), "mismatch vs reference"

    print("KERNEL_OK")
</pallas_src>

<mosaic_0001>
module attributes {stable_mosaic.version = 11 : i64} {
  func.func @gpt_fused_kernel(%arg0: i32, %arg1: memref<16x32xf32, #tpu.memory_space<vmem>>, %arg2: memref<16x16xf32, #tpu.memory_space<vmem>>, %arg3: memref<14x32xf32, #tpu.memory_space<vmem>>, %arg4: memref<2x128xf32, #tpu.memory_space<vmem>>, %arg5: memref<2x32x96xbf16, #tpu.memory_space<vmem>>, %arg6: memref<2x32x32xbf16, #tpu.memory_space<vmem>>, %arg7: memref<2x32x128xbf16, #tpu.memory_space<vmem>>, %arg8: memref<2x128x32xbf16, #tpu.memory_space<vmem>>, %arg9: memref<32x256xbf16, #tpu.memory_space<vmem>>, %arg10: memref<16x256xf32, #tpu.memory_space<vmem>>) attributes {dimension_semantics = [#tpu.dimension_semantics<parallel>], iteration_bounds = array<i64: 1>, scalar_prefetch = 0 : i64, scratch_operands = 0 : i64, tpu.core_type = #tpu.core_type<tc>, window_params = [{transform_indices = @transform_0, window_bounds = array<i64: 16, 32>}, {pipeline_mode = #tpu.pipeline_mode<synchronous>, transform_indices = @transform_1, window_bounds = array<i64: 16, 16>}, {pipeline_mode = #tpu.pipeline_mode<synchronous>, transform_indices = @transform_2, window_bounds = array<i64: 14, 32>}, {pipeline_mode = #tpu.pipeline_mode<synchronous>, transform_indices = @transform_3, window_bounds = array<i64: 2, 128>}, {pipeline_mode = #tpu.pipeline_mode<synchronous>, transform_indices = @transform_4, window_bounds = array<i64: 2, 32, 96>}, {pipeline_mode = #tpu.pipeline_mode<synchronous>, transform_indices = @transform_5, window_bounds = array<i64: 2, 32, 32>}, {pipeline_mode = #tpu.pipeline_mode<synchronous>, transform_indices = @transform_6, window_bounds = array<i64: 2, 32, 128>}, {pipeline_mode = #tpu.pipeline_mode<synchronous>, transform_indices = @transform_7, window_bounds = array<i64: 2, 128, 32>}, {pipeline_mode = #tpu.pipeline_mode<synchronous>, transform_indices = @transform_8, window_bounds = array<i64: 32, 256>}, {transform_indices = @transform_9, window_bounds = array<i64: 16, 256>}]} {
    %c0 = arith.constant 0 : index
    %c0_0 = arith.constant 0 : index
    %0 = vector.load %arg1[%c0, %c0_0] : memref<16x32xf32, #tpu.memory_space<vmem>>, vector<16x32xf32>
    %c0_1 = arith.constant 0 : index
    %c0_2 = arith.constant 0 : index
    %1 = vector.load %arg2[%c0_1, %c0_2] : memref<16x16xf32, #tpu.memory_space<vmem>>, vector<16x16xf32>
    %c0_3 = arith.constant 0 : index
    %c0_4 = arith.constant 0 : index
    %2 = vector.load %arg3[%c0_3, %c0_4] : memref<14x32xf32, #tpu.memory_space<vmem>>, vector<1x32xf32>
    %c1 = arith.constant 1 : index
    %c0_5 = arith.constant 0 : index
    %3 = vector.load %arg3[%c1, %c0_5] : memref<14x32xf32, #tpu.memory_space<vmem>>, vector<1x32xf32>
    %c2 = arith.constant 2 : index
    %c0_6 = arith.constant 0 : index
    %4 = vector.load %arg3[%c2, %c0_6] : memref<14x32xf32, #tpu.memory_space<vmem>>, vector<1x32xf32>
    %c3 = arith.constant 3 : index
    %c0_7 = arith.constant 0 : index
    %5 = vector.load %arg3[%c3, %c0_7] : memref<14x32xf32, #tpu.memory_space<vmem>>, vector<1x32xf32>
    %c4 = arith.constant 4 : index
    %c0_8 = arith.constant 0 : index
    %6 = vector.load %arg3[%c4, %c0_8] : memref<14x32xf32, #tpu.memory_space<vmem>>, vector<1x32xf32>
    %c5 = arith.constant 5 : index
    %c0_9 = arith.constant 0 : index
    %7 = vector.load %arg3[%c5, %c0_9] : memref<14x32xf32, #tpu.memory_space<vmem>>, vector<1x32xf32>
    %cst = arith.constant dense<0.000000e+00> : vector<16xf32>
    %8 = vector.multi_reduction <add>, %0, %cst [1] : vector<16x32xf32> to vector<16xf32>
    %9 = vector.shape_cast %8 : vector<16xf32> to vector<16x1xf32>
    %cst_10 = arith.constant 3.200000e+01 : f32
    %10 = vector.broadcast %cst_10 : f32 to vector<16x1xf32>
    %11 = arith.divf %9, %10 : vector<16x1xf32>
    %12 = vector.broadcast %11 : vector<16x1xf32> to vector<16x32xf32>
    %13 = arith.subf %0, %12 : vector<16x32xf32>
    %14 = arith.mulf %13, %13 : vector<16x32xf32>
    %cst_11 = arith.constant dense<0.000000e+00> : vector<16xf32>
    %15 = vector.multi_reduction <add>, %14, %cst_11 [1] : vector<16x32xf32> to vector<16xf32>
    %16 = vector.shape_cast %15 : vector<16xf32> to vector<16x1xf32>
    %cst_12 = arith.constant 3.200000e+01 : f32
    %17 = vector.broadcast %cst_12 : f32 to vector<16x1xf32>
    %18 = arith.divf %16, %17 : vector<16x1xf32>
    %19 = math.sqrt %18 : vector<16x1xf32>
    %cst_13 = arith.constant 9.99999974E-6 : f32
    %20 = vector.broadcast %cst_13 : f32 to vector<16x1xf32>
    %21 = arith.addf %19, %20 : vector<16x1xf32>
    %22 = tpu.reciprocal %21 {approx = true} : vector<16x1xf32> -> vector<16x1xf32>
    %23 = vector.broadcast %11 : vector<16x1xf32> to vector<16x32xf32>
    %24 = arith.subf %0, %23 : vector<16x32xf32>
    %25 = vector.broadcast %22 : vector<16x1xf32> to vector<16x32xf32>
    %26 = arith.mulf %24, %25 : vector<16x32xf32>
    %27 = vector.broadcast %2 : vector<1x32xf32> to vector<16x32xf32>
    %28 = arith.mulf %27, %26 : vector<16x32xf32>
    %29 = vector.broadcast %3 : vector<1x32xf32> to vector<16x32xf32>
    %30 = arith.addf %28, %29 : vector<16x32xf32>
    %c0_14 = arith.constant 0 : index
    %c0_15 = arith.constant 0 : index
    %c0_16 = arith.constant 0 : index
    %31 = vector.load %arg5[%c0_14, %c0_15, %c0_16] : memref<2x32x96xbf16, #tpu.memory_space<vmem>>, vector<1x32x96xbf16>
    %32 = vector.shape_cast %31 : vector<1x32x96xbf16> to vector<32x96xbf16>
    %33 = arith.truncf %30 : vector<16x32xf32> to vector<16x32xbf16>
    %cst_17 = arith.constant dense<0.000000e+00> : vector<16x96xf32>
    %34 = tpu.matmul %33, %32, %cst_17 {dimension_numbers = #tpu.dot_dimension_numbers<[1], [0], [0], [1], [0, 0, 1, 1], [], []>} : vector<16x32xbf16>, vector<32x96xbf16>, vector<16x96xf32> -> vector<16x96xf32>
    %35 = vector.extract_strided_slice %34 {offsets = [0, 0], sizes = [16, 8], strides = [1, 1]} : vector<16x96xf32> to vector<16x8xf32>
    %36 = vector.extract_strided_slice %34 {offsets = [0, 32], sizes = [16, 8], strides = [1, 1]} : vector<16x96xf32> to vector<16x8xf32>
    %37 = vector.extract_strided_slice %34 {offsets = [0, 64], sizes = [16, 8], strides = [1, 1]} : vector<16x96xf32> to vector<16x8xf32>
    %38 = arith.truncf %35 : vector<16x8xf32> to vector<16x8xbf16>
    %39 = arith.truncf %36 : vector<16x8xf32> to vector<16x8xbf16>
    %cst_18 = arith.constant dense<0.000000e+00> : vector<16x16xf32>
    %40 = tpu.matmul %38, %39, %cst_18 {dimension_numbers = #tpu.dot_dimension_numbers<[1], [1], [0], [0], [0, 0, 1, 0], [], []>} : vector<16x8xbf16>, vector<16x8xbf16>, vector<16x16xf32> -> vector<16x16xf32>
    %41 = arith.addf %40, %1 : vector<16x16xf32>
    %cst_19 = arith.constant dense<0xFF800000> : vector<16xf32>
    %42 = vector.multi_reduction <maximumf>, %41, %cst_19 [1] : vector<16x16xf32> to vector<16xf32>
    %43 = vector.shape_cast %42 : vector<16xf32> to vector<16x1xf32>
    %44 = vector.broadcast %43 : vector<16x1xf32> to vector<16x16xf32>
    %45 = arith.subf %41, %44 : vector<16x16xf32>
    %46 = math.exp %45 : vector<16x16xf32>
    %cst_20 = arith.constant dense<0.000000e+00> : vector<16xf32>
    %47 = vector.multi_reduction <add>, %46, %cst_20 [1] : vector<16x16xf32> to vector<16xf32>
    %48 = vector.shape_cast %47 : vector<16xf32> to vector<16x1xf32>
    %49 = arith.truncf %46 : vector<16x16xf32> to vector<16x16xbf16>
    %50 = arith.truncf %37 : vector<16x8xf32> to vector<16x8xbf16>
    %cst_21 = arith.constant dense<0.000000e+00> : vector<16x8xf32>
    %51 = tpu.matmul %49, %50, %cst_21 {dimension_numbers = #tpu.dot_dimension_numbers<[1], [0], [0], [1], [0, 0, 1, 1], [], []>} : vector<16x16xbf16>, vector<16x8xbf16>, vector<16x8xf32> -> vector<16x8xf32>
    %52 = tpu.reciprocal %48 {approx = true} : vector<16x1xf32> -> vector<16x1xf32>
    %53 = vector.broadcast %52 : vector<16x1xf32> to vector<16x8xf32>
    %54 = arith.mulf %51, %53 : vector<16x8xf32>
    %55 = vector.extract_strided_slice %34 {offsets = [0, 8], sizes = [16, 8], strides = [1, 1]} : vector<16x96xf32> to vector<16x8xf32>
    %56 = vector.extract_strided_slice %34 {offsets = [0, 40], sizes = [16, 8], strides = [1, 1]} : vector<16x96xf32> to vector<16x8xf32>
    %57 = vector.extract_strided_slice %34 {offsets = [0, 72], sizes = [16, 8], strides = [1, 1]} : vector<16x96xf32> to vector<16x8xf32>
    %58 = arith.truncf %55 : vector<16x8xf32> to vector<16x8xbf16>
    %59 = arith.truncf %56 : vector<16x8xf32> to vector<16x8xbf16>
    %cst_22 = arith.constant dense<0.000000e+00> : vector<16x16xf32>
    %60 = tpu.matmul %58, %59, %cst_22 {dimension_numbers = #tpu.dot_dimension_numbers<[1], [1], [0], [0], [0, 0, 1, 0], [], []>} : vector<16x8xbf16>, vector<16x8xbf16>, vector<16x16xf32> -> vector<16x16xf32>
    %61 = arith.addf %60, %1 : vector<16x16xf32>
    %cst_23 = arith.constant dense<0xFF800000> : vector<16xf32>
    %62 = vector.multi_reduction <maximumf>, %61, %cst_23 [1] : vector<16x16xf32> to vector<16xf32>
    %63 = vector.shape_cast %62 : vector<16xf32> to vector<16x1xf32>
    %64 = vector.broadcast %63 : vector<16x1xf32> to vector<16x16xf32>
    %65 = arith.subf %61, %64 : vector<16x16xf32>
    %66 = math.exp %65 : vector<16x16xf32>
    %cst_24 = arith.constant dense<0.000000e+00> : vector<16xf32>
    %67 = vector.multi_reduction <add>, %66, %cst_24 [1] : vector<16x16xf32> to vector<16xf32>
    %68 = vector.shape_cast %67 : vector<16xf32> to vector<16x1xf32>
    %69 = arith.truncf %66 : vector<16x16xf32> to vector<16x16xbf16>
    %70 = arith.truncf %57 : vector<16x8xf32> to vector<16x8xbf16>
    %cst_25 = arith.constant dense<0.000000e+00> : vector<16x8xf32>
    %71 = tpu.matmul %69, %70, %cst_25 {dimension_numbers = #tpu.dot_dimension_numbers<[1], [0], [0], [1], [0, 0, 1, 1], [], []>} : vector<16x16xbf16>, vector<16x8xbf16>, vector<16x8xf32> -> vector<16x8xf32>
    %72 = tpu.reciprocal %68 {approx = true} : vector<16x1xf32> -> vector<16x1xf32>
    %73 = vector.broadcast %72 : vector<16x1xf32> to vector<16x8xf32>
    %74 = arith.mulf %71, %73 : vector<16x8xf32>
    %75 = vector.extract_strided_slice %34 {offsets = [0, 16], sizes = [16, 8], strides = [1, 1]} : vector<16x96xf32> to vector<16x8xf32>
    %76 = vector.extract_strided_slice %34 {offsets = [0, 48], sizes = [16, 8], strides = [1, 1]} : vector<16x96xf32> to vector<16x8xf32>
    %77 = vector.extract_strided_slice %34 {offsets = [0, 80], sizes = [16, 8], strides = [1, 1]} : vector<16x96xf32> to vector<16x8xf32>
    %78 = arith.truncf %75 : vector<16x8xf32> to vector<16x8xbf16>
    %79 = arith.truncf %76 : vector<16x8xf32> to vector<16x8xbf16>
    %cst_26 = arith.constant dense<0.000000e+00> : vector<16x16xf32>
    %80 = tpu.matmul %78, %79, %cst_26 {dimension_numbers = #tpu.dot_dimension_numbers<[1], [1], [0], [0], [0, 0, 1, 0], [], []>} : vector<16x8xbf16>, vector<16x8xbf16>, vector<16x16xf32> -> vector<16x16xf32>
    %81 = arith.addf %80, %1 : vector<16x16xf32>
    %cst_27 = arith.constant dense<0xFF800000> : vector<16xf32>
    %82 = vector.multi_reduction <maximumf>, %81, %cst_27 [1] : vector<16x16xf32> to vector<16xf32>
    %83 = vector.shape_cast %82 : vector<16xf32> to vector<16x1xf32>
    %84 = vector.broadcast %83 : vector<16x1xf32> to vector<16x16xf32>
    %85 = arith.subf %81, %84 : vector<16x16xf32>
    %86 = math.exp %85 : vector<16x16xf32>
    %cst_28 = arith.constant dense<0.000000e+00> : vector<16xf32>
    %87 = vector.multi_reduction <add>, %86, %cst_28 [1] : vector<16x16xf32> to vector<16xf32>
    %88 = vector.shape_cast %87 : vector<16xf32> to vector<16x1xf32>
    %89 = arith.truncf %86 : vector<16x16xf32> to vector<16x16xbf16>
    %90 = arith.truncf %77 : vector<16x8xf32> to vector<16x8xbf16>
    %cst_29 = arith.constant dense<0.000000e+00> : vector<16x8xf32>
    %91 = tpu.matmul %89, %90, %cst_29 {dimension_numbers = #tpu.dot_dimension_numbers<[1], [0], [0], [1], [0, 0, 1, 1], [], []>} : vector<16x16xbf16>, vector<16x8xbf16>, vector<16x8xf32> -> vector<16x8xf32>
    %92 = tpu.reciprocal %88 {approx = true} : vector<16x1xf32> -> vector<16x1xf32>
    %93 = vector.broadcast %92 : vector<16x1xf32> to vector<16x8xf32>
    %94 = arith.mulf %91, %93 : vector<16x8xf32>
    %95 = vector.extract_strided_slice %34 {offsets = [0, 24], sizes = [16, 8], strides = [1, 1]} : vector<16x96xf32> to vector<16x8xf32>
    %96 = vector.extract_strided_slice %34 {offsets = [0, 56], sizes = [16, 8], strides = [1, 1]} : vector<16x96xf32> to vector<16x8xf32>
    %97 = vector.extract_strided_slice %34 {offsets = [0, 88], sizes = [16, 8], strides = [1, 1]} : vector<16x96xf32> to vector<16x8xf32>
    %98 = arith.truncf %95 : vector<16x8xf32> to vector<16x8xbf16>
    %99 = arith.truncf %96 : vector<16x8xf32> to vector<16x8xbf16>
    %cst_30 = arith.constant dense<0.000000e+00> : vector<16x16xf32>
    %100 = tpu.matmul %98, %99, %cst_30 {dimension_numbers = #tpu.dot_dimension_numbers<[1], [1], [0], [0], [0, 0, 1, 0], [], []>} : vector<16x8xbf16>, vector<16x8xbf16>, vector<16x16xf32> -> vector<16x16xf32>
    %101 = arith.addf %100, %1 : vector<16x16xf32>
    %cst_31 = arith.constant dense<0xFF800000> : vector<16xf32>
    %102 = vector.multi_reduction <maximumf>, %101, %cst_31 [1] : vector<16x16xf32> to vector<16xf32>
    %103 = vector.shape_cast %102 : vector<16xf32> to vector<16x1xf32>
    %104 = vector.broadcast %103 : vector<16x1xf32> to vector<16x16xf32>
    %105 = arith.subf %101, %104 : vector<16x16xf32>
    %106 = math.exp %105 : vector<16x16xf32>
    %cst_32 = arith.constant dense<0.000000e+00> : vector<16xf32>
    %107 = vector.multi_reduction <add>, %106, %cst_32 [1] : vector<16x16xf32> to vector<16xf32>
    %108 = vector.shape_cast %107 : vector<16xf32> to vector<16x1xf32>
    %109 = arith.truncf %106 : vector<16x16xf32> to vector<16x16xbf16>
    %110 = arith.truncf %97 : vector<16x8xf32> to vector<16x8xbf16>
    %cst_33 = arith.constant dense<0.000000e+00> : vector<16x8xf32>
    %111 = tpu.matmul %109, %110, %cst_33 {dimension_numbers = #tpu.dot_dimension_numbers<[1], [0], [0], [1], [0, 0, 1, 1], [], []>} : vector<16x16xbf16>, vector<16x8xbf16>, vector<16x8xf32> -> vector<16x8xf32>
    %112 = tpu.reciprocal %108 {approx = true} : vector<16x1xf32> -> vector<16x1xf32>
    %113 = vector.broadcast %112 : vector<16x1xf32> to vector<16x8xf32>
    %114 = arith.mulf %111, %113 : vector<16x8xf32>
    %115 = tpu.concatenate %54, %74, %94, %114 in 1 : vector<16x8xf32>, vector<16x8xf32>, vector<16x8xf32>, vector<16x8xf32> -> vector<16x32xf32>
    %c0_34 = arith.constant 0 : index
    %c0_35 = arith.constant 0 : index
    %c0_36 = arith.constant 0 : index
    %116 = vector.load %arg6[%c0_34, %c0_35, %c0_36] : memref<2x32x32xbf16, #tpu.memory_space<vmem>>, vector<1x32x32xbf16>
    %117 = vector.shape_cast %116 : vector<1x32x32xbf16> to vector<32x32xbf16>
    %118 = arith.truncf %115 : vector<16x32xf32> to vector<16x32xbf16>
    %cst_37 = arith.constant dense<0.000000e+00> : vector<16x32xf32>
    %119 = tpu.matmul %118, %117, %cst_37 {dimension_numbers = #tpu.dot_dimension_numbers<[1], [0], [0], [1], [0, 0, 1, 1], [], []>} : vector<16x32xbf16>, vector<32x32xbf16>, vector<16x32xf32> -> vector<16x32xf32>
    %120 = arith.addf %0, %119 : vector<16x32xf32>
    %121 = vector.broadcast %4 : vector<1x32xf32> to vector<16x32xf32>
    %122 = arith.addf %120, %121 : vector<16x32xf32>
    %cst_38 = arith.constant dense<0.000000e+00> : vector<16xf32>
    %123 = vector.multi_reduction <add>, %122, %cst_38 [1] : vector<16x32xf32> to vector<16xf32>
    %124 = vector.shape_cast %123 : vector<16xf32> to vector<16x1xf32>
    %cst_39 = arith.constant 3.200000e+01 : f32
    %125 = vector.broadcast %cst_39 : f32 to vector<16x1xf32>
    %126 = arith.divf %124, %125 : vector<16x1xf32>
    %127 = vector.broadcast %126 : vector<16x1xf32> to vector<16x32xf32>
    %128 = arith.subf %122, %127 : vector<16x32xf32>
    %129 = arith.mulf %128, %128 : vector<16x32xf32>
    %cst_40 = arith.constant dense<0.000000e+00> : vector<16xf32>
    %130 = vector.multi_reduction <add>, %129, %cst_40 [1] : vector<16x32xf32> to vector<16xf32>
    %131 = vector.shape_cast %130 : vector<16xf32> to vector<16x1xf32>
    %cst_41 = arith.constant 3.200000e+01 : f32
    %132 = vector.broadcast %cst_41 : f32 to vector<16x1xf32>
    %133 = arith.divf %131, %132 : vector<16x1xf32>
    %134 = math.sqrt %133 : vector<16x1xf32>
    %cst_42 = arith.constant 9.99999974E-6 : f32
    %135 = vector.broadcast %cst_42 : f32 to vector<16x1xf32>
    %136 = arith.addf %134, %135 : vector<16x1xf32>
    %137 = tpu.reciprocal %136 {approx = true} : vector<16x1xf32> -> vector<16x1xf32>
    %138 = vector.broadcast %126 : vector<16x1xf32> to vector<16x32xf32>
    %139 = arith.subf %122, %138 : vector<16x32xf32>
    %140 = vector.broadcast %137 : vector<16x1xf32> to vector<16x32xf32>
    %141 = arith.mulf %139, %140 : vector<16x32xf32>
    %142 = vector.broadcast %5 : vector<1x32xf32> to vector<16x32xf32>
    %143 = arith.mulf %142, %141 : vector<16x32xf32>
    %144 = vector.broadcast %6 : vector<1x32xf32> to vector<16x32xf32>
    %145 = arith.addf %143, %144 : vector<16x32xf32>
    %c0_43 = arith.constant 0 : index
    %c0_44 = arith.constant 0 : index
    %c0_45 = arith.constant 0 : index
    %146 = vector.load %arg7[%c0_43, %c0_44, %c0_45] : memref<2x32x128xbf16, #tpu.memory_space<vmem>>, vector<1x32x128xbf16>
    %147 = vector.shape_cast %146 : vector<1x32x128xbf16> to vector<32x128xbf16>
    %148 = arith.truncf %145 : vector<16x32xf32> to vector<16x32xbf16>
    %cst_46 = arith.constant dense<0.000000e+00> : vector<16x128xf32>
    %149 = tpu.matmul %148, %147, %cst_46 {dimension_numbers = #tpu.dot_dimension_numbers<[1], [0], [0], [1], [0, 0, 1, 1], [], []>} : vector<16x32xbf16>, vector<32x128xbf16>, vector<16x128xf32> -> vector<16x128xf32>
    %c0_47 = arith.constant 0 : index
    %c0_48 = arith.constant 0 : index
    %150 = vector.load %arg4[%c0_47, %c0_48] : memref<2x128xf32, #tpu.memory_space<vmem>>, vector<1x128xf32>
    %151 = vector.broadcast %150 : vector<1x128xf32> to vector<16x128xf32>
    %152 = arith.addf %149, %151 : vector<16x128xf32>
    %cst_49 = arith.constant 5.000000e-01 : f32
    %153 = vector.broadcast %cst_49 : f32 to vector<16x128xf32>
    %154 = arith.mulf %153, %152 : vector<16x128xf32>
    %155 = arith.mulf %152, %152 : vector<16x128xf32>
    %156 = arith.mulf %152, %155 : vector<16x128xf32>
    %cst_50 = arith.constant 4.471500e-02 : f32
    %157 = vector.broadcast %cst_50 : f32 to vector<16x128xf32>
    %158 = arith.mulf %157, %156 : vector<16x128xf32>
    %159 = arith.addf %152, %158 : vector<16x128xf32>
    %cst_51 = arith.constant 0.797884583 : f32
    %160 = vector.broadcast %cst_51 : f32 to vector<16x128xf32>
    %161 = arith.mulf %160, %159 : vector<16x128xf32>
    %162 = math.tanh %161 : vector<16x128xf32>
    %cst_52 = arith.constant 1.000000e+00 : f32
    %163 = vector.broadcast %cst_52 : f32 to vector<16x128xf32>
    %164 = arith.addf %163, %162 : vector<16x128xf32>
    %165 = arith.mulf %154, %164 : vector<16x128xf32>
    %c0_53 = arith.constant 0 : index
    %c0_54 = arith.constant 0 : index
    %c0_55 = arith.constant 0 : index
    %166 = vector.load %arg8[%c0_53, %c0_54, %c0_55] : memref<2x128x32xbf16, #tpu.memory_space<vmem>>, vector<1x128x32xbf16>
    %167 = vector.shape_cast %166 : vector<1x128x32xbf16> to vector<128x32xbf16>
    %168 = arith.truncf %165 : vector<16x128xf32> to vector<16x128xbf16>
    %cst_56 = arith.constant dense<0.000000e+00> : vector<16x32xf32>
    %169 = tpu.matmul %168, %167, %cst_56 {dimension_numbers = #tpu.dot_dimension_numbers<[1], [0], [0], [1], [0, 0, 1, 1], [], []>} : vector<16x128xbf16>, vector<128x32xbf16>, vector<16x32xf32> -> vector<16x32xf32>
    %170 = arith.addf %122, %169 : vector<16x32xf32>
    %171 = vector.broadcast %7 : vector<1x32xf32> to vector<16x32xf32>
    %172 = arith.addf %170, %171 : vector<16x32xf32>
    %c6 = arith.constant 6 : index
    %c0_57 = arith.constant 0 : index
    %173 = vector.load %arg3[%c6, %c0_57] : memref<14x32xf32, #tpu.memory_space<vmem>>, vector<1x32xf32>
    %c7 = arith.constant 7 : index
    %c0_58 = arith.constant 0 : index
    %174 = vector.load %arg3[%c7, %c0_58] : memref<14x32xf32, #tpu.memory_space<vmem>>, vector<1x32xf32>
    %c8 = arith.constant 8 : index
    %c0_59 = arith.constant 0 : index
    %175 = vector.load %arg3[%c8, %c0_59] : memref<14x32xf32, #tpu.memory_space<vmem>>, vector<1x32xf32>
    %c9 = arith.constant 9 : index
    %c0_60 = arith.constant 0 : index
    %176 = vector.load %arg3[%c9, %c0_60] : memref<14x32xf32, #tpu.memory_space<vmem>>, vector<1x32xf32>
    %c10 = arith.constant 10 : index
    %c0_61 = arith.constant 0 : index
    %177 = vector.load %arg3[%c10, %c0_61] : memref<14x32xf32, #tpu.memory_space<vmem>>, vector<1x32xf32>
    %c11 = arith.constant 11 : index
    %c0_62 = arith.constant 0 : index
    %178 = vector.load %arg3[%c11, %c0_62] : memref<14x32xf32, #tpu.memory_space<vmem>>, vector<1x32xf32>
    %cst_63 = arith.constant dense<0.000000e+00> : vector<16xf32>
    %179 = vector.multi_reduction <add>, %172, %cst_63 [1] : vector<16x32xf32> to vector<16xf32>
    %180 = vector.shape_cast %179 : vector<16xf32> to vector<16x1xf32>
    %cst_64 = arith.constant 3.200000e+01 : f32
    %181 = vector.broadcast %cst_64 : f32 to vector<16x1xf32>
    %182 = arith.divf %180, %181 : vector<16x1xf32>
    %183 = vector.broadcast %182 : vector<16x1xf32> to vector<16x32xf32>
    %184 = arith.subf %172, %183 : vector<16x32xf32>
    %185 = arith.mulf %184, %184 : vector<16x32xf32>
    %cst_65 = arith.constant dense<0.000000e+00> : vector<16xf32>
    %186 = vector.multi_reduction <add>, %185, %cst_65 [1] : vector<16x32xf32> to vector<16xf32>
    %187 = vector.shape_cast %186 : vector<16xf32> to vector<16x1xf32>
    %cst_66 = arith.constant 3.200000e+01 : f32
    %188 = vector.broadcast %cst_66 : f32 to vector<16x1xf32>
    %189 = arith.divf %187, %188 : vector<16x1xf32>
    %190 = math.sqrt %189 : vector<16x1xf32>
    %cst_67 = arith.constant 9.99999974E-6 : f32
    %191 = vector.broadcast %cst_67 : f32 to vector<16x1xf32>
    %192 = arith.addf %190, %191 : vector<16x1xf32>
    %193 = tpu.reciprocal %192 {approx = true} : vector<16x1xf32> -> vector<16x1xf32>
    %194 = vector.broadcast %182 : vector<16x1xf32> to vector<16x32xf32>
    %195 = arith.subf %172, %194 : vector<16x32xf32>
    %196 = vector.broadcast %193 : vector<16x1xf32> to vector<16x32xf32>
    %197 = arith.mulf %195, %196 : vector<16x32xf32>
    %198 = vector.broadcast %173 : vector<1x32xf32> to vector<16x32xf32>
    %199 = arith.mulf %198, %197 : vector<16x32xf32>
    %200 = vector.broadcast %174 : vector<1x32xf32> to vector<16x32xf32>
    %201 = arith.addf %199, %200 : vector<16x32xf32>
    %c1_68 = arith.constant 1 : index
    %c0_69 = arith.constant 0 : index
    %c0_70 = arith.constant 0 : index
    %202 = vector.load %arg5[%c1_68, %c0_69, %c0_70] : memref<2x32x96xbf16, #tpu.memory_space<vmem>>, vector<1x32x96xbf16>
    %203 = vector.shape_cast %202 : vector<1x32x96xbf16> to vector<32x96xbf16>
    %204 = arith.truncf %201 : vector<16x32xf32> to vector<16x32xbf16>
    %cst_71 = arith.constant dense<0.000000e+00> : vector<16x96xf32>
    %205 = tpu.matmul %204, %203, %cst_71 {dimension_numbers = #tpu.dot_dimension_numbers<[1], [0], [0], [1], [0, 0, 1, 1], [], []>} : vector<16x32xbf16>, vector<32x96xbf16>, vector<16x96xf32> -> vector<16x96xf32>
    %206 = vector.extract_strided_slice %205 {offsets = [0, 0], sizes = [16, 8], strides = [1, 1]} : vector<16x96xf32> to vector<16x8xf32>
    %207 = vector.extract_strided_slice %205 {offsets = [0, 32], sizes = [16, 8], strides = [1, 1]} : vector<16x96xf32> to vector<16x8xf32>
    %208 = vector.extract_strided_slice %205 {offsets = [0, 64], sizes = [16, 8], strides = [1, 1]} : vector<16x96xf32> to vector<16x8xf32>
    %209 = arith.truncf %206 : vector<16x8xf32> to vector<16x8xbf16>
    %210 = arith.truncf %207 : vector<16x8xf32> to vector<16x8xbf16>
    %cst_72 = arith.constant dense<0.000000e+00> : vector<16x16xf32>
    %211 = tpu.matmul %209, %210, %cst_72 {dimension_numbers = #tpu.dot_dimension_numbers<[1], [1], [0], [0], [0, 0, 1, 0], [], []>} : vector<16x8xbf16>, vector<16x8xbf16>, vector<16x16xf32> -> vector<16x16xf32>
    %212 = arith.addf %211, %1 : vector<16x16xf32>
    %cst_73 = arith.constant dense<0xFF800000> : vector<16xf32>
    %213 = vector.multi_reduction <maximumf>, %212, %cst_73 [1] : vector<16x16xf32> to vector<16xf32>
    %214 = vector.shape_cast %213 : vector<16xf32> to vector<16x1xf32>
    %215 = vector.broadcast %214 : vector<16x1xf32> to vector<16x16xf32>
    %216 = arith.subf %212, %215 : vector<16x16xf32>
    %217 = math.exp %216 : vector<16x16xf32>
    %cst_74 = arith.constant dense<0.000000e+00> : vector<16xf32>
    %218 = vector.multi_reduction <add>, %217, %cst_74 [1] : vector<16x16xf32> to vector<16xf32>
    %219 = vector.shape_cast %218 : vector<16xf32> to vector<16x1xf32>
    %220 = arith.truncf %217 : vector<16x16xf32> to vector<16x16xbf16>
    %221 = arith.truncf %208 : vector<16x8xf32> to vector<16x8xbf16>
    %cst_75 = arith.constant dense<0.000000e+00> : vector<16x8xf32>
    %222 = tpu.matmul %220, %221, %cst_75 {dimension_numbers = #tpu.dot_dimension_numbers<[1], [0], [0], [1], [0, 0, 1, 1], [], []>} : vector<16x16xbf16>, vector<16x8xbf16>, vector<16x8xf32> -> vector<16x8xf32>
    %223 = tpu.reciprocal %219 {approx = true} : vector<16x1xf32> -> vector<16x1xf32>
    %224 = vector.broadcast %223 : vector<16x1xf32> to vector<16x8xf32>
    %225 = arith.mulf %222, %224 : vector<16x8xf32>
    %226 = vector.extract_strided_slice %205 {offsets = [0, 8], sizes = [16, 8], strides = [1, 1]} : vector<16x96xf32> to vector<16x8xf32>
    %227 = vector.extract_strided_slice %205 {offsets = [0, 40], sizes = [16, 8], strides = [1, 1]} : vector<16x96xf32> to vector<16x8xf32>
    %228 = vector.extract_strided_slice %205 {offsets = [0, 72], sizes = [16, 8], strides = [1, 1]} : vector<16x96xf32> to vector<16x8xf32>
    %229 = arith.truncf %226 : vector<16x8xf32> to vector<16x8xbf16>
    %230 = arith.truncf %227 : vector<16x8xf32> to vector<16x8xbf16>
    %cst_76 = arith.constant dense<0.000000e+00> : vector<16x16xf32>
    %231 = tpu.matmul %229, %230, %cst_76 {dimension_numbers = #tpu.dot_dimension_numbers<[1], [1], [0], [0], [0, 0, 1, 0], [], []>} : vector<16x8xbf16>, vector<16x8xbf16>, vector<16x16xf32> -> vector<16x16xf32>
    %232 = arith.addf %231, %1 : vector<16x16xf32>
    %cst_77 = arith.constant dense<0xFF800000> : vector<16xf32>
    %233 = vector.multi_reduction <maximumf>, %232, %cst_77 [1] : vector<16x16xf32> to vector<16xf32>
    %234 = vector.shape_cast %233 : vector<16xf32> to vector<16x1xf32>
    %235 = vector.broadcast %234 : vector<16x1xf32> to vector<16x16xf32>
    %236 = arith.subf %232, %235 : vector<16x16xf32>
    %237 = math.exp %236 : vector<16x16xf32>
    %cst_78 = arith.constant dense<0.000000e+00> : vector<16xf32>
    %238 = vector.multi_reduction <add>, %237, %cst_78 [1] : vector<16x16xf32> to vector<16xf32>
    %239 = vector.shape_cast %238 : vector<16xf32> to vector<16x1xf32>
    %240 = arith.truncf %237 : vector<16x16xf32> to vector<16x16xbf16>
    %241 = arith.truncf %228 : vector<16x8xf32> to vector<16x8xbf16>
    %cst_79 = arith.constant dense<0.000000e+00> : vector<16x8xf32>
    %242 = tpu.matmul %240, %241, %cst_79 {dimension_numbers = #tpu.dot_dimension_numbers<[1], [0], [0], [1], [0, 0, 1, 1], [], []>} : vector<16x16xbf16>, vector<16x8xbf16>, vector<16x8xf32> -> vector<16x8xf32>
    %243 = tpu.reciprocal %239 {approx = true} : vector<16x1xf32> -> vector<16x1xf32>
    %244 = vector.broadcast %243 : vector<16x1xf32> to vector<16x8xf32>
    %245 = arith.mulf %242, %244 : vector<16x8xf32>
    %246 = vector.extract_strided_slice %205 {offsets = [0, 16], sizes = [16, 8], strides = [1, 1]} : vector<16x96xf32> to vector<16x8xf32>
    %247 = vector.extract_strided_slice %205 {offsets = [0, 48], sizes = [16, 8], strides = [1, 1]} : vector<16x96xf32> to vector<16x8xf32>
    %248 = vector.extract_strided_slice %205 {offsets = [0, 80], sizes = [16, 8], strides = [1, 1]} : vector<16x96xf32> to vector<16x8xf32>
    %249 = arith.truncf %246 : vector<16x8xf32> to vector<16x8xbf16>
    %250 = arith.truncf %247 : vector<16x8xf32> to vector<16x8xbf16>
    %cst_80 = arith.constant dense<0.000000e+00> : vector<16x16xf32>
    %251 = tpu.matmul %249, %250, %cst_80 {dimension_numbers = #tpu.dot_dimension_numbers<[1], [1], [0], [0], [0, 0, 1, 0], [], []>} : vector<16x8xbf16>, vector<16x8xbf16>, vector<16x16xf32> -> vector<16x16xf32>
    %252 = arith.addf %251, %1 : vector<16x16xf32>
    %cst_81 = arith.constant dense<0xFF800000> : vector<16xf32>
    %253 = vector.multi_reduction <maximumf>, %252, %cst_81 [1] : vector<16x16xf32> to vector<16xf32>
    %254 = vector.shape_cast %253 : vector<16xf32> to vector<16x1xf32>
    %255 = vector.broadcast %254 : vector<16x1xf32> to vector<16x16xf32>
    %256 = arith.subf %252, %255 : vector<16x16xf32>
    %257 = math.exp %256 : vector<16x16xf32>
    %cst_82 = arith.constant dense<0.000000e+00> : vector<16xf32>
    %258 = vector.multi_reduction <add>, %257, %cst_82 [1] : vector<16x16xf32> to vector<16xf32>
    %259 = vector.shape_cast %258 : vector<16xf32> to vector<16x1xf32>
    %260 = arith.truncf %257 : vector<16x16xf32> to vector<16x16xbf16>
    %261 = arith.truncf %248 : vector<16x8xf32> to vector<16x8xbf16>
    %cst_83 = arith.constant dense<0.000000e+00> : vector<16x8xf32>
    %262 = tpu.matmul %260, %261, %cst_83 {dimension_numbers = #tpu.dot_dimension_numbers<[1], [0], [0], [1], [0, 0, 1, 1], [], []>} : vector<16x16xbf16>, vector<16x8xbf16>, vector<16x8xf32> -> vector<16x8xf32>
    %263 = tpu.reciprocal %259 {approx = true} : vector<16x1xf32> -> vector<16x1xf32>
    %264 = vector.broadcast %263 : vector<16x1xf32> to vector<16x8xf32>
    %265 = arith.mulf %262, %264 : vector<16x8xf32>
    %266 = vector.extract_strided_slice %205 {offsets = [0, 24], sizes = [16, 8], strides = [1, 1]} : vector<16x96xf32> to vector<16x8xf32>
    %267 = vector.extract_strided_slice %205 {offsets = [0, 56], sizes = [16, 8], strides = [1, 1]} : vector<16x96xf32> to vector<16x8xf32>
    %268 = vector.extract_strided_slice %205 {offsets = [0, 88], sizes = [16, 8], strides = [1, 1]} : vector<16x96xf32> to vector<16x8xf32>
    %269 = arith.truncf %266 : vector<16x8xf32> to vector<16x8xbf16>
    %270 = arith.truncf %267 : vector<16x8xf32> to vector<16x8xbf16>
    %cst_84 = arith.constant dense<0.000000e+00> : vector<16x16xf32>
    %271 = tpu.matmul %269, %270, %cst_84 {dimension_numbers = #tpu.dot_dimension_numbers<[1], [1], [0], [0], [0, 0, 1, 0], [], []>} : vector<16x8xbf16>, vector<16x8xbf16>, vector<16x16xf32> -> vector<16x16xf32>
    %272 = arith.addf %271, %1 : vector<16x16xf32>
    %cst_85 = arith.constant dense<0xFF800000> : vector<16xf32>
    %273 = vector.multi_reduction <maximumf>, %272, %cst_85 [1] : vector<16x16xf32> to vector<16xf32>
    %274 = vector.shape_cast %273 : vector<16xf32> to vector<16x1xf32>
    %275 = vector.broadcast %274 : vector<16x1xf32> to vector<16x16xf32>
    %276 = arith.subf %272, %275 : vector<16x16xf32>
    %277 = math.exp %276 : vector<16x16xf32>
    %cst_86 = arith.constant dense<0.000000e+00> : vector<16xf32>
    %278 = vector.multi_reduction <add>, %277, %cst_86 [1] : vector<16x16xf32> to vector<16xf32>
    %279 = vector.shape_cast %278 : vector<16xf32> to vector<16x1xf32>
    %280 = arith.truncf %277 : vector<16x16xf32> to vector<16x16xbf16>
    %281 = arith.truncf %268 : vector<16x8xf32> to vector<16x8xbf16>
    %cst_87 = arith.constant dense<0.000000e+00> : vector<16x8xf32>
    %282 = tpu.matmul %280, %281, %cst_87 {dimension_numbers = #tpu.dot_dimension_numbers<[1], [0], [0], [1], [0, 0, 1, 1], [], []>} : vector<16x16xbf16>, vector<16x8xbf16>, vector<16x8xf32> -> vector<16x8xf32>
    %283 = tpu.reciprocal %279 {approx = true} : vector<16x1xf32> -> vector<16x1xf32>
    %284 = vector.broadcast %283 : vector<16x1xf32> to vector<16x8xf32>
    %285 = arith.mulf %282, %284 : vector<16x8xf32>
    %286 = tpu.concatenate %225, %245, %265, %285 in 1 : vector<16x8xf32>, vector<16x8xf32>, vector<16x8xf32>, vector<16x8xf32> -> vector<16x32xf32>
    %c1_88 = arith.constant 1 : index
    %c0_89 = arith.constant 0 : index
    %c0_90 = arith.constant 0 : index
    %287 = vector.load %arg6[%c1_88, %c0_89, %c0_90] : memref<2x32x32xbf16, #tpu.memory_space<vmem>>, vector<1x32x32xbf16>
    %288 = vector.shape_cast %287 : vector<1x32x32xbf16> to vector<32x32xbf16>
    %289 = arith.truncf %286 : vector<16x32xf32> to vector<16x32xbf16>
    %cst_91 = arith.constant dense<0.000000e+00> : vector<16x32xf32>
    %290 = tpu.matmul %289, %288, %cst_91 {dimension_numbers = #tpu.dot_dimension_numbers<[1], [0], [0], [1], [0, 0, 1, 1], [], []>} : vector<16x32xbf16>, vector<32x32xbf16>, vector<16x32xf32> -> vector<16x32xf32>
    %291 = arith.addf %172, %290 : vector<16x32xf32>
    %292 = vector.broadcast %175 : vector<1x32xf32> to vector<16x32xf32>
    %293 = arith.addf %291, %292 : vector<16x32xf32>
    %cst_92 = arith.constant dense<0.000000e+00> : vector<16xf32>
    %294 = vector.multi_reduction <add>, %293, %cst_92 [1] : vector<16x32xf32> to vector<16xf32>
    %295 = vector.shape_cast %294 : vector<16xf32> to vector<16x1xf32>
    %cst_93 = arith.constant 3.200000e+01 : f32
    %296 = vector.broadcast %cst_93 : f32 to vector<16x1xf32>
    %297 = arith.divf %295, %296 : vector<16x1xf32>
    %298 = vector.broadcast %297 : vector<16x1xf32> to vector<16x32xf32>
    %299 = arith.subf %293, %298 : vector<16x32xf32>
    %300 = arith.mulf %299, %299 : vector<16x32xf32>
    %cst_94 = arith.constant dense<0.000000e+00> : vector<16xf32>
    %301 = vector.multi_reduction <add>, %300, %cst_94 [1] : vector<16x32xf32> to vector<16xf32>
    %302 = vector.shape_cast %301 : vector<16xf32> to vector<16x1xf32>
    %cst_95 = arith.constant 3.200000e+01 : f32
    %303 = vector.broadcast %cst_95 : f32 to vector<16x1xf32>
    %304 = arith.divf %302, %303 : vector<16x1xf32>
    %305 = math.sqrt %304 : vector<16x1xf32>
    %cst_96 = arith.constant 9.99999974E-6 : f32
    %306 = vector.broadcast %cst_96 : f32 to vector<16x1xf32>
    %307 = arith.addf %305, %306 : vector<16x1xf32>
    %308 = tpu.reciprocal %307 {approx = true} : vector<16x1xf32> -> vector<16x1xf32>
    %309 = vector.broadcast %297 : vector<16x1xf32> to vector<16x32xf32>
    %310 = arith.subf %293, %309 : vector<16x32xf32>
    %311 = vector.broadcast %308 : vector<16x1xf32> to vector<16x32xf32>
    %312 = arith.mulf %310, %311 : vector<16x32xf32>
    %313 = vector.broadcast %176 : vector<1x32xf32> to vector<16x32xf32>
    %314 = arith.mulf %313, %312 : vector<16x32xf32>
    %315 = vector.broadcast %177 : vector<1x32xf32> to vector<16x32xf32>
    %316 = arith.addf %314, %315 : vector<16x32xf32>
    %c1_97 = arith.constant 1 : index
    %c0_98 = arith.constant 0 : index
    %c0_99 = arith.constant 0 : index
    %317 = vector.load %arg7[%c1_97, %c0_98, %c0_99] : memref<2x32x128xbf16, #tpu.memory_space<vmem>>, vector<1x32x128xbf16>
    %318 = vector.shape_cast %317 : vector<1x32x128xbf16> to vector<32x128xbf16>
    %319 = arith.truncf %316 : vector<16x32xf32> to vector<16x32xbf16>
    %cst_100 = arith.constant dense<0.000000e+00> : vector<16x128xf32>
    %320 = tpu.matmul %319, %318, %cst_100 {dimension_numbers = #tpu.dot_dimension_numbers<[1], [0], [0], [1], [0, 0, 1, 1], [], []>} : vector<16x32xbf16>, vector<32x128xbf16>, vector<16x128xf32> -> vector<16x128xf32>
    %c1_101 = arith.constant 1 : index
    %c0_102 = arith.constant 0 : index
    %321 = vector.load %arg4[%c1_101, %c0_102] : memref<2x128xf32, #tpu.memory_space<vmem>>, vector<1x128xf32>
    %322 = vector.broadcast %321 : vector<1x128xf32> to vector<16x128xf32>
    %323 = arith.addf %320, %322 : vector<16x128xf32>
    %cst_103 = arith.constant 5.000000e-01 : f32
    %324 = vector.broadcast %cst_103 : f32 to vector<16x128xf32>
    %325 = arith.mulf %324, %323 : vector<16x128xf32>
    %326 = arith.mulf %323, %323 : vector<16x128xf32>
    %327 = arith.mulf %323, %326 : vector<16x128xf32>
    %cst_104 = arith.constant 4.471500e-02 : f32
    %328 = vector.broadcast %cst_104 : f32 to vector<16x128xf32>
    %329 = arith.mulf %328, %327 : vector<16x128xf32>
    %330 = arith.addf %323, %329 : vector<16x128xf32>
    %cst_105 = arith.constant 0.797884583 : f32
    %331 = vector.broadcast %cst_105 : f32 to vector<16x128xf32>
    %332 = arith.mulf %331, %330 : vector<16x128xf32>
    %333 = math.tanh %332 : vector<16x128xf32>
    %cst_106 = arith.constant 1.000000e+00 : f32
    %334 = vector.broadcast %cst_106 : f32 to vector<16x128xf32>
    %335 = arith.addf %334, %333 : vector<16x128xf32>
    %336 = arith.mulf %325, %335 : vector<16x128xf32>
    %c1_107 = arith.constant 1 : index
    %c0_108 = arith.constant 0 : index
    %c0_109 = arith.constant 0 : index
    %337 = vector.load %arg8[%c1_107, %c0_108, %c0_109] : memref<2x128x32xbf16, #tpu.memory_space<vmem>>, vector<1x128x32xbf16>
    %338 = vector.shape_cast %337 : vector<1x128x32xbf16> to vector<128x32xbf16>
    %339 = arith.truncf %336 : vector<16x128xf32> to vector<16x128xbf16>
    %cst_110 = arith.constant dense<0.000000e+00> : vector<16x32xf32>
    %340 = tpu.matmul %339, %338, %cst_110 {dimension_numbers = #tpu.dot_dimension_numbers<[1], [0], [0], [1], [0, 0, 1, 1], [], []>} : vector<16x128xbf16>, vector<128x32xbf16>, vector<16x32xf32> -> vector<16x32xf32>
    %341 = arith.addf %293, %340 : vector<16x32xf32>
    %342 = vector.broadcast %178 : vector<1x32xf32> to vector<16x32xf32>
    %343 = arith.addf %341, %342 : vector<16x32xf32>
    %c12 = arith.constant 12 : index
    %c0_111 = arith.constant 0 : index
    %344 = vector.load %arg3[%c12, %c0_111] : memref<14x32xf32, #tpu.memory_space<vmem>>, vector<1x32xf32>
    %c13 = arith.constant 13 : index
    %c0_112 = arith.constant 0 : index
    %345 = vector.load %arg3[%c13, %c0_112] : memref<14x32xf32, #tpu.memory_space<vmem>>, vector<1x32xf32>
    %cst_113 = arith.constant dense<0.000000e+00> : vector<16xf32>
    %346 = vector.multi_reduction <add>, %343, %cst_113 [1] : vector<16x32xf32> to vector<16xf32>
    %347 = vector.shape_cast %346 : vector<16xf32> to vector<16x1xf32>
    %cst_114 = arith.constant 3.200000e+01 : f32
    %348 = vector.broadcast %cst_114 : f32 to vector<16x1xf32>
    %349 = arith.divf %347, %348 : vector<16x1xf32>
    %350 = vector.broadcast %349 : vector<16x1xf32> to vector<16x32xf32>
    %351 = arith.subf %343, %350 : vector<16x32xf32>
    %352 = arith.mulf %351, %351 : vector<16x32xf32>
    %cst_115 = arith.constant dense<0.000000e+00> : vector<16xf32>
    %353 = vector.multi_reduction <add>, %352, %cst_115 [1] : vector<16x32xf32> to vector<16xf32>
    %354 = vector.shape_cast %353 : vector<16xf32> to vector<16x1xf32>
    %cst_116 = arith.constant 3.200000e+01 : f32
    %355 = vector.broadcast %cst_116 : f32 to vector<16x1xf32>
    %356 = arith.divf %354, %355 : vector<16x1xf32>
    %357 = math.sqrt %356 : vector<16x1xf32>
    %cst_117 = arith.constant 9.99999974E-6 : f32
    %358 = vector.broadcast %cst_117 : f32 to vector<16x1xf32>
    %359 = arith.addf %357, %358 : vector<16x1xf32>
    %360 = tpu.reciprocal %359 {approx = true} : vector<16x1xf32> -> vector<16x1xf32>
    %361 = vector.broadcast %349 : vector<16x1xf32> to vector<16x32xf32>
    %362 = arith.subf %343, %361 : vector<16x32xf32>
    %363 = vector.broadcast %360 : vector<16x1xf32> to vector<16x32xf32>
    %364 = arith.mulf %362, %363 : vector<16x32xf32>
    %365 = vector.broadcast %344 : vector<1x32xf32> to vector<16x32xf32>
    %366 = arith.mulf %365, %364 : vector<16x32xf32>
    %367 = vector.broadcast %345 : vector<1x32xf32> to vector<16x32xf32>
    %368 = arith.addf %366, %367 : vector<16x32xf32>
    %c0_118 = arith.constant 0 : index
    %c0_119 = arith.constant 0 : index
    %369 = vector.load %arg9[%c0_118, %c0_119] : memref<32x256xbf16, #tpu.memory_space<vmem>>, vector<32x256xbf16>
    %370 = arith.truncf %368 : vector<16x32xf32> to vector<16x32xbf16>
    %cst_120 = arith.constant dense<0.000000e+00> : vector<16x256xf32>
    %371 = tpu.matmul %370, %369, %cst_120 {dimension_numbers = #tpu.dot_dimension_numbers<[1], [0], [0], [1], [0, 0, 1, 1], [], []>} : vector<16x32xbf16>, vector<32x256xbf16>, vector<16x256xf32> -> vector<16x256xf32>
    %c0_121 = arith.constant 0 : index
    %c0_122 = arith.constant 0 : index
    %372 = vector.load %arg10[%c0_121, %c0_122] : memref<16x256xf32, #tpu.memory_space<vmem>>, vector<16x256xf32>
    tpu.vector_store %arg10[%c0_121, %c0_122], %371 {strides = array<i32>} : memref<16x256xf32, #tpu.memory_space<vmem>>, vector<16x256xf32>,
    return
  }
  func.func @transform_0(%arg0: i32) -> (i32, i32) {
    %c0_i32 = arith.constant 0 : i32
    %c0_i32_0 = arith.constant 0 : i32
    return %arg0, %c0_i32 : i32, i32
  }
  func.func @transform_1(%arg0: i32) -> (i32, i32) {
    %c0_i32 = arith.constant 0 : i32
    %c0_i32_0 = arith.constant 0 : i32
    %c0_i32_1 = arith.constant 0 : i32
    return %c0_i32, %c0_i32_0 : i32, i32
  }
  func.func @transform_2(%arg0: i32) -> (i32, i32) {
    %c0_i32 = arith.constant 0 : i32
    %c0_i32_0 = arith.constant 0 : i32
    %c0_i32_1 = arith.constant 0 : i32
    return %c0_i32, %c0_i32_0 : i32, i32
  }
  func.func @transform_3(%arg0: i32) -> (i32, i32) {
    %c0_i32 = arith.constant 0 : i32
    %c0_i32_0 = arith.constant 0 : i32
    %c0_i32_1 = arith.constant 0 : i32
    return %c0_i32, %c0_i32_0 : i32, i32
  }
  func.func @transform_4(%arg0: i32) -> (i32, i32, i32) {
    %c0_i32 = arith.constant 0 : i32
    %c0_i32_0 = arith.constant 0 : i32
    %c0_i32_1 = arith.constant 0 : i32
    %c0_i32_2 = arith.constant 0 : i32
    return %c0_i32, %c0_i32_0, %c0_i32_1 : i32, i32, i32
  }
  func.func @transform_5(%arg0: i32) -> (i32, i32, i32) {
    %c0_i32 = arith.constant 0 : i32
    %c0_i32_0 = arith.constant 0 : i32
    %c0_i32_1 = arith.constant 0 : i32
    %c0_i32_2 = arith.constant 0 : i32
    return %c0_i32, %c0_i32_0, %c0_i32_1 : i32, i32, i32
  }
  func.func @transform_6(%arg0: i32) -> (i32, i32, i32) {
    %c0_i32 = arith.constant 0 : i32
    %c0_i32_0 = arith.constant 0 : i32
    %c0_i32_1 = arith.constant 0 : i32
    %c0_i32_2 = arith.constant 0 : i32
    return %c0_i32, %c0_i32_0, %c0_i32_1 : i32, i32, i32
  }
  func.func @transform_7(%arg0: i32) -> (i32, i32, i32) {
    %c0_i32 = arith.constant 0 : i32
    %c0_i32_0 = arith.constant 0 : i32
    %c0_i32_1 = arith.constant 0 : i32
    %c0_i32_2 = arith.constant 0 : i32
    return %c0_i32, %c0_i32_0, %c0_i32_1 : i32, i32, i32
  }
  func.func @transform_8(%arg0: i32) -> (i32, i32) {
    %c0_i32 = arith.constant 0 : i32
    %c0_i32_0 = arith.constant 0 : i32
    %c0_i32_1 = arith.constant 0 : i32
    return %c0_i32, %c0_i32_0 : i32, i32
  }
  func.func @transform_9(%arg0: i32) -> (i32, i32) {
    %c0_i32 = arith.constant 0 : i32
    %c0_i32_0 = arith.constant 0 : i32
    return %arg0, %c0_i32 : i32, i32
  }
}

</mosaic_0001>

<llo_original>
// kernel: forward.1
$region0: #{forward.1}
  #allocation0 [shape = 'u32[]', space=smem, size = 0x4, offset = 0x4, fixed_abs, tag = 'smem constant byte address 0x4 - core index']
  #allocation1 [shape = 'u32[144,128]{1,0:T(1,128)}', space=vmem, size = 0x12000, scoped, tag = 'internal scratch']
  %s0 = inlined_call_operand.vmem [shape: f32[16,32], index: 0, kind: input, shape index: {}]
  %s1 = inlined_call_operand.vmem [shape: f32[16,16], index: 1, kind: input, shape index: {}]
  %s2 = inlined_call_operand.vmem [shape: f32[14,32], index: 2, kind: input, shape index: {}]
  %s3 = inlined_call_operand.vmem [shape: f32[2,128], index: 3, kind: input, shape index: {}]
  %s4 = inlined_call_operand.vmem [shape: bf16[2,32,96], index: 4, kind: input, shape index: {}]
  %s5 = inlined_call_operand.vmem [shape: bf16[2,32,32], index: 5, kind: input, shape index: {}]
  %s6 = inlined_call_operand.vmem [shape: bf16[2,32,128], index: 6, kind: input, shape index: {}]
  %s7 = inlined_call_operand.vmem [shape: bf16[2,128,32], index: 7, kind: input, shape index: {}]
  %s8 = inlined_call_operand.vmem [shape: bf16[32,256], index: 8, kind: input, shape index: {}]
  %s9 = inlined_call_operand.hbm [shape: f32[16,256], index: 9, kind: output, shape index: {}]
  %s10 = sld [smem:[#allocation0]]
  $region46: #{forward.1} parent=0
    _
  %s12 = ssub.s32 1, %s10
  %s13 = scalar_select 0, %s12, %s10
  $region1: #{forward.1} parent=0
    #allocation2 [shape = 'u8[16384]{0}', space=vmem, size = 0x4000, scoped, tag = 'output window, operand 0, single buffered']
    #allocation3 [shape = 's32[1]{0}', space=sflag, size = 0x4, scoped, tag = 'scoped memory for forward.1']
    %14 = vsyncpa [#allocation3], 0
    // Predicated region
    $region2: #{forward.1} parent=1 // pred_check
      _
    $region3: #{forward.1} parent=1 // pred_check_branch
      %16 = sbr.rel (0) target = $region5
    $region4: #{forward.1} parent=1 // pred_region
      _
    $region5: #{forward.1} parent=1 // pred_fallthru
      _
    // Predicated region
    $region6: #{forward.1} parent=1 // pred_check
      _
    $region7: #{forward.1} parent=1 // pred_check_branch
      %18 = sbr.rel (0) target = $region9
    $region8: #{forward.1} parent=1 // pred_region
      _
    $region9: #{forward.1} parent=1 // pred_fallthru
      _
    // Predicated region
    $region10: #{forward.1} parent=1 // pred_check
      _
    $region11: #{forward.1} parent=1 // pred_check_branch
      %20 = sbr.rel (0) target = $region13
    $region12: #{forward.1} parent=1 // pred_region
      _
    $region13: #{forward.1} parent=1 // pred_fallthru
      _
    // Predicated region
    $region14: #{forward.1} parent=1 // pred_check
      _
    $region15: #{forward.1} parent=1 // pred_check_branch
      %22 = sbr.rel (0) target = $region17
    $region16: #{forward.1} parent=1 // pred_region
      _
    $region17: #{forward.1} parent=1 // pred_fallthru
      _
    // Predicated region
    $region18: #{forward.1} parent=1 // pred_check
      _
    $region19: #{forward.1} parent=1 // pred_check_branch
      %24 = sbr.rel (0) target = $region21
    $region20: #{forward.1} parent=1 // pred_region
      _
    $region21: #{forward.1} parent=1 // pred_fallthru
      _
    // Predicated region
    $region22: #{forward.1} parent=1 // pred_check
      _
    $region23: #{forward.1} parent=1 // pred_check_branch
      %26 = sbr.rel (0) target = $region25
    $region24: #{forward.1} parent=1 // pred_region
      _
    $region25: #{forward.1} parent=1 // pred_fallthru
      _
    // Predicated region
    $region26: #{forward.1} parent=1 // pred_check
      _
    $region27: #{forward.1} parent=1 // pred_check_branch
      %28 = sbr.rel (0) target = $region29
    $region28: #{forward.1} parent=1 // pred_region
      _
    $region29: #{forward.1} parent=1 // pred_fallthru
      _
    // Predicated region
    $region30: #{forward.1} parent=1 // pred_check
      _
    $region31: #{forward.1} parent=1 // pred_check_branch
      %30 = sbr.rel (0) target = $region33
    $region32: #{forward.1} parent=1 // pred_region
      _
    $region33: #{forward.1} parent=1 // pred_fallthru
      _
    // Predicated region
    $region34: #{forward.1} parent=1 // pred_check
      _
    $region35: #{forward.1} parent=1 // pred_check_branch
      %32 = sbr.rel (0) target = $region37
    $region36: #{forward.1} parent=1 // pred_region
      _
    $region37: #{forward.1} parent=1 // pred_fallthru
      _
    %v34 = vld [vmem:[%s0] sm:$0xff]
    %v35 = vld [vmem:[%s0 + $0x8] sm:$0xff]
    %v36 = vld [vmem:[%s1] sm:$0xff]
    %v37 = vld [vmem:[%s1 + $0x8] sm:$0xff]
    %v38 = vld [vmem:[%s2] sm:$0x1]
    %v39 = vld [vmem:[%s2 + $0x1] sm:$0x1]
    %v40 = vld [vmem:[%s2 + $0x2] sm:$0x1]
    %v41 = vld [vmem:[%s2 + $0x3] sm:$0x1]
    %v42 = vld [vmem:[%s2 + $0x4] sm:$0x1]
    %v43 = vld [vmem:[%s2 + $0x5] sm:$0x1]
    %vm44 = vcmask 261120
    %v45 = vsel %vm44, %v34, 0.0
    %46 = vadd.xlane.f32.xlu0 %v45
    %v47 = vpop.xlane.xlu0 %46
    %v48 = vsel %vm44, %v35, 0.0
    %49 = vadd.xlane.f32.xlu0 %v48
    %v50 = vpop.xlane.xlu0 %49
    %v51 = vrcp.pop 32.0
    %v52 = vmul.f32 %v47, %v51
    %v53 = vmul.f32 %v50, %v51
    %v54 = vsub.f32 %v34, %v52
    %v55 = vsub.f32 %v35, %v53
    %v56 = vmul.f32 %v54, %v54
    %v57 = vmul.f32 %v55, %v55
    %v58 = vsel %vm44, %v56, 0.0
    %59 = vadd.xlane.f32.xlu0 %v58
    %v60 = vpop.xlane.xlu0 %59
    %v61 = vsel %vm44, %v57, 0.0
    %62 = vadd.xlane.f32.xlu0 %v61
    %v63 = vpop.xlane.xlu0 %62
    %v64 = vmul.f32 %v60, %v51
    %v65 = vmul.f32 %v63, %v51
    %v66 = vrsqrt.pop %v64
    %v67 = vmul.f32 %v64, %v66
    %vm68 = vcmp.eq.f32.partialorder %v64, inf
    %v69 = vsel %vm68, %v64, %v67
    %vm70 = vcmp.eq.f32.partialorder %v64, 0.0
    %v71 = vand.u32 %v64, 2147483648
    %v72 = vsel %vm70, %v71, %v69
    %v73 = vrsqrt.pop %v65
    %v74 = vmul.f32 %v65, %v73
    %vm75 = vcmp.eq.f32.partialorder %v65, inf
    %v76 = vsel %vm75, %v65, %v74
    %vm77 = vcmp.eq.f32.partialorder %v65, 0.0
    %v78 = vand.u32 %v65, 2147483648
    %v79 = vsel %vm77, %v78, %v76
    %v80 = vadd.f32 %v72, 1e-05
    %v81 = vadd.f32 %v79, 1e-05
    %v82 = vrcp.pop %v80
    %v83 = vrcp.pop %v81
    %v84 = vmul.f32 %v54, %v82
    %v85 = vmul.f32 %v55, %v83
    %v86 = vlaneseq
    %v87 = vshrl.u32 %v86, 7
    %v88 = vsub.s32 0, %v87
    %v89 = vrot.slane %v38, %v88
    %v90 = vmul.f32 %v89, %v84
    %v91 = vmul.f32 %v89, %v85
    %v92 = vlaneseq
    %v93 = vshrl.u32 %v92, 7
    %v94 = vsub.s32 0, %v93
    %v95 = vrot.slane %v39, %v94
    %v96 = vadd.f32 %v90, %v95
    %v97 = vadd.f32 %v91, %v95
    %v98 = vld [vmem:[%s4] sm:$0xf]
    %v99 = vld [vmem:[%s4 + $0x4] sm:$0xf]
    %v100 = vld [vmem:[%s4 + $0x8] sm:$0xf]
    %v101 = vld [vmem:[%s4 + $0xc] sm:$0xf]
    %v102 = vpack.c.bf16 %v97, %v96
    %v107 = vunpack.c.l.b16 %v98
    %v108 = vunpack.c.l.b16 %v99
    %v109 = vunpack.c.l.b16 %v100
    %v110 = vunpack.c.l.b16 %v101
    %v111 = vpack.c.b16 %v108, %v107
    %v112 = vpack.c.b16 %v110, %v109
    %v116 = vsel %vm44, %v102, 0
    %118 = vmatprep.subr.bf16.mxu0 0
    %119 = vmatpush1.bf16.msra.mxu0 %v111
    %120 = vmatprep.subr.bf16.mxu0 0
    %121 = vmatpush1.bf16.msra.mxu0 %v112
    %122 = vmatprep.subr.bf16.mxu0 0
    %123 = vmatpush1.bf16.msra.mxu0 0
    %124 = vmatprep.subr.bf16.mxu0 0
    %125 = vmatpush1.bf16.msra.mxu0 0
    %126 = vmatprep.subr.bf16.mxu0 0
    %127 = vmatpush1.bf16.msra.mxu0 0
    %128 = vmatprep.subr.bf16.mxu0 0
    %129 = vmatpush1.bf16.msra.mxu0 0
    %130 = vmatprep.subr.bf16.mxu0 0
    %131 = vmatpush1.bf16.msra.mxu0 0
    %132 = vmatprep.subr.bf16.mxu0 0
    %133 = vmatpush1.bf16.msra.mxu0 0
    %134 = vmatprep.subr.bf16.mxu0 0
    %135 = vmatpush1.bf16.msra.mxu0 0
    %136 = vmatprep.subr.bf16.mxu0 0
    %137 = vmatpush1.bf16.msra.mxu0 0
    %138 = vmatprep.subr.bf16.mxu0 0
    %139 = vmatpush1.bf16.msra.mxu0 0
    %140 = vmatprep.subr.bf16.mxu0 0
    %141 = vmatpush1.bf16.msra.mxu0 0
    %142 = vmatprep.subr.bf16.mxu0 0
    %143 = vmatpush1.bf16.msra.mxu0 0
    %144 = vmatprep.subr.bf16.mxu0 0
    %145 = vmatpush1.bf16.msra.mxu0 0
    %146 = vmatprep.subr.bf16.mxu0 0
    %147 = vmatpush1.bf16.msra.mxu0 0
    %148 = vmatprep.subr.bf16.mxu0 0
    %149 = vmatpush1.bf16.msra.mxu0 0
    %150 = vmatprep.mubr.bf16.mxu0 0
    %151 = vmatmul.mubr.bf16.gmra.mrb[0].mxu0 %v116
    %v152 = vpop.f32.mrb[0].mxu0
    %v153 = vadd.f32 0.0, %v152
    %v154 = vpop.f32.mrb[0].mxu0
    %v155 = vpop.f32.mrb[0].mxu0
    %v156 = vadd.f32 0.0, %v155
    %v157 = vpop.f32.mrb[0].mxu0
    %158 = vdwg.mxu0
    %v159 = vpack.c.bf16 %v156, %v153
    %161 = vrot.lane.b32.xlu0 %v159, 96
    %v162 = vpop.permute.xlu0 %161
    %vm163 = vcmask 64512
    %v165 = vsel %vm163, %v159, 0
    %v168 = vsel %vm163, %v162, 0
    %170 = vmatprep.subr.bf16.mxu0 0
    %171 = vmatpush1.bf16.xpose.msra.mxu0 %v168
    %172 = vmatprep.subr.bf16.mxu0 0
    %173 = vmatpush1.bf16.xpose.msra.mxu0 0
    %174 = vmatprep.subr.bf16.mxu0 0
    %175 = vmatpush1.bf16.xpose.msra.mxu0 0
    %176 = vmatprep.subr.bf16.mxu0 0
    %177 = vmatpush1.bf16.xpose.msra.mxu0 0
    %178 = vmatprep.subr.bf16.mxu0 0
    %179 = vmatpush1.bf16.xpose.msra.mxu0 0
    %180 = vmatprep.subr.bf16.mxu0 0
    %181 = vmatpush1.bf16.xpose.msra.mxu0 0
    %182 = vmatprep.subr.bf16.mxu0 0
    %183 = vmatpush1.bf16.xpose.msra.mxu0 0
    %184 = vmatprep.subr.bf16.mxu0 0
    %185 = vmatpush1.bf16.xpose.msra.mxu0 0
    %186 = vmatprep.subr.bf16.mxu0 0
    %187 = vmatpush1.bf16.xpose.msra.mxu0 0
    %188 = vmatprep.subr.bf16.mxu0 0
    %189 = vmatpush1.bf16.xpose.msra.mxu0 0
    %190 = vmatprep.subr.bf16.mxu0 0
    %191 = vmatpush1.bf16.xpose.msra.mxu0 0
    %192 = vmatprep.subr.bf16.mxu0 0
    %193 = vmatpush1.bf16.xpose.msra.mxu0 0
    %194 = vmatprep.subr.bf16.mxu0 0
    %195 = vmatpush1.bf16.xpose.msra.mxu0 0
    %196 = vmatprep.subr.bf16.mxu0 0
    %197 = vmatpush1.bf16.xpose.msra.mxu0 0
    %198 = vmatprep.subr.bf16.mxu0 0
    %199 = vmatpush1.bf16.xpose.msra.mxu0 0
    %200 = vmatprep.subr.bf16.mxu0 0
    %201 = vmatpush1.bf16.xpose.msra.mxu0 0
    %202 = vmatprep.mubr.bf16.mxu0 0
    %203 = vmatmul.mubr.bf16.gmra.mrb[0].mxu0 %v165
    %v204 = vpop.f32.mrb[0].mxu0
    %v205 = vadd.f32 %v36, %v204
    %v206 = vpop.f32.mrb[0].mxu0
    %v207 = vpop.f32.mrb[0].mxu0
    %v208 = vadd.f32 %v37, %v207
    %v209 = vpop.f32.mrb[0].mxu0
    %210 = vdwg.mxu0
    %vm211 = vcmask 130048
    %v212 = vsel %vm211, %v205, -inf
    %213 = vmax.xlane.f32.xlu0 %v212
    %v214 = vpop.xlane.xlu0 %213
    %v215 = vsel %vm211, %v208, -inf
    %216 = vmax.xlane.f32.xlu0 %v215
    %v217 = vpop.xlane.xlu0 %216
    %v218 = vsub.f32 %v205, %v214
    %v219 = vsub.f32 %v208, %v217
    %v220 = vmul.f32 %v218, 1.442695
    %v221 = vpow.pop %v220
    %v222 = vmul.f32 %v219, 1.442695
    %v223 = vpow.pop %v222
    %v224 = vsel %vm211, %v221, 0.0
    %225 = vadd.xlane.f32.xlu0 %v224
    %v226 = vpop.xlane.xlu0 %225
    %v227 = vsel %vm211, %v223, 0.0
    %228 = vadd.xlane.f32.xlu0 %v227
    %v229 = vpop.xlane.xlu0 %228
    %v230 = vpack.c.bf16 %v223, %v221
    %231 = vrot.lane.b32.xlu0 %v159, 64
    %v232 = vpop.permute.xlu0 %231
    %v235 = vsel %vm211, %v230, 0
    %237 = vmatprep.subr.bf16.mxu0 0
    %238 = vmatpush1.bf16.msra.mxu0 %v232
    %239 = vmatprep.subr.bf16.mxu0 0
    %240 = vmatpush1.bf16.msra.mxu0 0
    %241 = vmatprep.subr.bf16.mxu0 0
    %242 = vmatpush1.bf16.msra.mxu0 0
    %243 = vmatprep.subr.bf16.mxu0 0
    %244 = vmatpush1.bf16.msra.mxu0 0
    %245 = vmatprep.subr.bf16.mxu0 0
    %246 = vmatpush1.bf16.msra.mxu0 0
    %247 = vmatprep.subr.bf16.mxu0 0
    %248 = vmatpush1.bf16.msra.mxu0 0
    %249 = vmatprep.subr.bf16.mxu0 0
    %250 = vmatpush1.bf16.msra.mxu0 0
    %251 = vmatprep.subr.bf16.mxu0 0
    %252 = vmatpush1.bf16.msra.mxu0 0
    %253 = vmatprep.subr.bf16.mxu0 0
    %254 = vmatpush1.bf16.msra.mxu0 0
    %255 = vmatprep.subr.bf16.mxu0 0
    %256 = vmatpush1.bf16.msra.mxu0 0
    %257 = vmatprep.subr.bf16.mxu0 0
    %258 = vmatpush1.bf16.msra.mxu0 0
    %259 = vmatprep.subr.bf16.mxu0 0
    %260 = vmatpush1.bf16.msra.mxu0 0
    %261 = vmatprep.subr.bf16.mxu0 0
    %262 = vmatpush1.bf16.msra.mxu0 0
    %263 = vmatprep.subr.bf16.mxu0 0
    %264 = vmatpush1.bf16.msra.mxu0 0
    %265 = vmatprep.subr.bf16.mxu0 0
    %266 = vmatpush1.bf16.msra.mxu0 0
    %267 = vmatprep.subr.bf16.mxu0 0
    %268 = vmatpush1.bf16.msra.mxu0 0
    %269 = vmatprep.mubr.bf16.mxu0 0
    %270 = vmatmul.mubr.bf16.gmra.mrb[0].mxu0 %v235
    %v271 = vpop.f32.mrb[0].mxu0
    %v272 = vadd.f32 0.0, %v271
    %v273 = vpop.f32.mrb[0].mxu0
    %v274 = vpop.f32.mrb[0].mxu0
    %v275 = vadd.f32 0.0, %v274
    %v276 = vpop.f32.mrb[0].mxu0
    %277 = vdwg.mxu0
    %v278 = vrcp.pop %v226
    %v279 = vrcp.pop %v229
    %v280 = vmul.f32 %v272, %v278
    %v281 = vmul.f32 %v275, %v279
    %282 = vrot.lane.b32.xlu0 %v159, 120
    %v283 = vpop.permute.xlu0 %282
    %284 = vrot.lane.b32.xlu0 %v159, 88
    %v285 = vpop.permute.xlu0 %284
    %v287 = vsel %vm163, %v283, 0
    %v290 = vsel %vm163, %v285, 0
    %292 = vmatprep.subr.bf16.mxu0 0
    %293 = vmatpush1.bf16.xpose.msra.mxu0 %v290
    %294 = vmatprep.subr.bf16.mxu0 0
    %295 = vmatpush1.bf16.xpose.msra.mxu0 0
    %296 = vmatprep.subr.bf16.mxu0 0
    %297 = vmatpush1.bf16.xpose.msra.mxu0 0
    %298 = vmatprep.subr.bf16.mxu0 0
    %299 = vmatpush1.bf16.xpose.msra.mxu0 0
    %300 = vmatprep.subr.bf16.mxu0 0
    %301 = vmatpush1.bf16.xpose.msra.mxu0 0
    %302 = vmatprep.subr.bf16.mxu0 0
    %303 = vmatpush1.bf16.xpose.msra.mxu0 0
    %304 = vmatprep.subr.bf16.mxu0 0
    %305 = vmatpush1.bf16.xpose.msra.mxu0 0
    %306 = vmatprep.subr.bf16.mxu0 0
    %307 = vmatpush1.bf16.xpose.msra.mxu0 0
    %308 = vmatprep.subr.bf16.mxu0 0
    %309 = vmatpush1.bf16.xpose.msra.mxu0 0
    %310 = vmatprep.subr.bf16.mxu0 0
    %311 = vmatpush1.bf16.xpose.msra.mxu0 0
    %312 = vmatprep.subr.bf16.mxu0 0
    %313 = vmatpush1.bf16.xpose.msra.mxu0 0
    %314 = vmatprep.subr.bf16.mxu0 0
    %315 = vmatpush1.bf16.xpose.msra.mxu0 0
    %316 = vmatprep.subr.bf16.mxu0 0
    %317 = vmatpush1.bf16.xpose.msra.mxu0 0
    %318 = vmatprep.subr.bf16.mxu0 0
    %319 = vmatpush1.bf16.xpose.msra.mxu0 0
    %320 = vmatprep.subr.bf16.mxu0 0
    %321 = vmatpush1.bf16.xpose.msra.mxu0 0
    %322 = vmatprep.subr.bf16.mxu0 0
    %323 = vmatpush1.bf16.xpose.msra.mxu0 0
    %324 = vmatprep.mubr.bf16.mxu0 0
    %325 = vmatmul.mubr.bf16.gmra.mrb[0].mxu0 %v287
    %v326 = vpop.f32.mrb[0].mxu0
    %v327 = vadd.f32 %v36, %v326
    %v328 = vpop.f32.mrb[0].mxu0
    %v329 = vpop.f32.mrb[0].mxu0
    %v330 = vadd.f32 %v37, %v329
    %v331 = vpop.f32.mrb[0].mxu0
    %332 = vdwg.mxu0
    %v333 = vsel %vm211, %v327, -inf
    %334 = vmax.xlane.f32.xlu0 %v333
    %v335 = vpop.xlane.xlu0 %334
    %v336 = vsel %vm211, %v330, -inf
    %337 = vmax.xlane.f32.xlu0 %v336
    %v338 = vpop.xlane.xlu0 %337
    %v339 = vsub.f32 %v327, %v335
    %v340 = vsub.f32 %v330, %v338
    %v341 = vmul.f32 %v339, 1.442695
    %v342 = vpow.pop %v341
    %v343 = vmul.f32 %v340, 1.442695
    %v344 = vpow.pop %v343
    %v345 = vsel %vm211, %v342, 0.0
    %346 = vadd.xlane.f32.xlu0 %v345
    %v347 = vpop.xlane.xlu0 %346
    %v348 = vsel %vm211, %v344, 0.0
    %349 = vadd.xlane.f32.xlu0 %v348
    %v350 = vpop.xlane.xlu0 %349
    %v351 = vpack.c.bf16 %v344, %v342
    %352 = vrot.lane.b32.xlu0 %v159, 56
    %v353 = vpop.permute.xlu0 %352
    %v356 = vsel %vm211, %v351, 0
    %358 = vmatprep.subr.bf16.mxu0 0
    %359 = vmatpush1.bf16.msra.mxu0 %v353
    %360 = vmatprep.subr.bf16.mxu0 0
    %361 = vmatpush1.bf16.msra.mxu0 0
    %362 = vmatprep.subr.bf16.mxu0 0
    %363 = vmatpush1.bf16.msra.mxu0 0
    %364 = vmatprep.subr.bf16.mxu0 0
    %365 = vmatpush1.bf16.msra.mxu0 0
    %366 = vmatprep.subr.bf16.mxu0 0
    %367 = vmatpush1.bf16.msra.mxu0 0
    %368 = vmatprep.subr.bf16.mxu0 0
    %369 = vmatpush1.bf16.msra.mxu0 0
    %370 = vmatprep.subr.bf16.mxu0 0
    %371 = vmatpush1.bf16.msra.mxu0 0
    %372 = vmatprep.subr.bf16.mxu0 0
    %373 = vmatpush1.bf16.msra.mxu0 0
    %374 = vmatprep.subr.bf16.mxu0 0
    %375 = vmatpush1.bf16.msra.mxu0 0
    %376 = vmatprep.subr.bf16.mxu0 0
    %377 = vmatpush1.bf16.msra.mxu0 0
    %378 = vmatprep.subr.bf16.mxu0 0
    %379 = vmatpush1.bf16.msra.mxu0 0
    %380 = vmatprep.subr.bf16.mxu0 0
    %381 = vmatpush1.bf16.msra.mxu0 0
    %382 = vmatprep.subr.bf16.mxu0 0
    %383 = vmatpush1.bf16.msra.mxu0 0
    %384 = vmatprep.subr.bf16.mxu0 0
    %385 = vmatpush1.bf16.msra.mxu0 0
    %386 = vmatprep.subr.bf16.mxu0 0
    %387 = vmatpush1.bf16.msra.mxu0 0
    %388 = vmatprep.subr.bf16.mxu0 0
    %389 = vmatpush1.bf16.msra.mxu0 0
    %390 = vmatprep.mubr.bf16.mxu0 0
    %391 = vmatmul.mubr.bf16.gmra.mrb[0].mxu0 %v356
    %v392 = vpop.f32.mrb[0].mxu0
    %v393 = vadd.f32 0.0, %v392
    %v394 = vpop.f32.mrb[0].mxu0
    %v395 = vpop.f32.mrb[0].mxu0
    %v396 = vadd.f32 0.0, %v395
    %v397 = vpop.f32.mrb[0].mxu0
    %398 = vdwg.mxu0
    %v399 = vrcp.pop %v347
    %v400 = vrcp.pop %v350
    %v401 = vmul.f32 %v393, %v399
    %v402 = vmul.f32 %v396, %v400
    %403 = vrot.lane.b32.xlu0 %v159, 112
    %v404 = vpop.permute.xlu0 %403
    %405 = vrot.lane.b32.xlu0 %v159, 80
    %v406 = vpop.permute.xlu0 %405
    %v408 = vsel %vm163, %v404, 0
    %v411 = vsel %vm163, %v406, 0
    %413 = vmatprep.subr.bf16.mxu0 0
    %414 = vmatpush1.bf16.xpose.msra.mxu0 %v411
    %415 = vmatprep.subr.bf16.mxu0 0
    %416 = vmatpush1.bf16.xpose.msra.mxu0 0
    %417 = vmatprep.subr.bf16.mxu0 0
    %418 = vmatpush1.bf16.xpose.msra.mxu0 0
    %419 = vmatprep.subr.bf16.mxu0 0
    %420 = vmatpush1.bf16.xpose.msra.mxu0 0
    %421 = vmatprep.subr.bf16.mxu0 0
    %422 = vmatpush1.bf16.xpose.msra.mxu0 0
    %423 = vmatprep.subr.bf16.mxu0 0
    %424 = vmatpush1.bf16.xpose.msra.mxu0 0
    %425 = vmatprep.subr.bf16.mxu0 0
    %426 = vmatpush1.bf16.xpose.msra.mxu0 0
    %427 = vmatprep.subr.bf16.mxu0 0
    %428 = vmatpush1.bf16.xpose.msra.mxu0 0
    %429 = vmatprep.subr.bf16.mxu0 0
    %430 = vmatpush1.bf16.xpose.msra.mxu0 0
    %431 = vmatprep.subr.bf16.mxu0 0
    %432 = vmatpush1.bf16.xpose.msra.mxu0 0
    %433 = vmatprep.subr.bf16.mxu0 0
    %434 = vmatpush1.bf16.xpose.msra.mxu0 0
    %435 = vmatprep.subr.bf16.mxu0 0
    %436 = vmatpush1.bf16.xpose.msra.mxu0 0
    %437 = vmatprep.subr.bf16.mxu0 0
    %438 = vmatpush1.bf16.xpose.msra.mxu0 0
    %439 = vmatprep.subr.bf16.mxu0 0
    %440 = vmatpush1.bf16.xpose.msra.mxu0 0
    %441 = vmatprep.subr.bf16.mxu0 0
    %442 = vmatpush1.bf16.xpose.msra.mxu0 0
    %443 = vmatprep.subr.bf16.mxu0 0
    %444 = vmatpush1.bf16.xpose.msra.mxu0 0
    %445 = vmatprep.mubr.bf16.mxu0 0
    %446 = vmatmul.mubr.bf16.gmra.mrb[0].mxu0 %v408
    %v447 = vpop.f32.mrb[0].mxu0
    %v448 = vadd.f32 %v36, %v447
    %v449 = vpop.f32.mrb[0].mxu0
    %v450 = vpop.f32.mrb[0].mxu0
    %v451 = vadd.f32 %v37, %v450
    %v452 = vpop.f32.mrb[0].mxu0
    %453 = vdwg.mxu0
    %v454 = vsel %vm211, %v448, -inf
    %455 = vmax.xlane.f32.xlu0 %v454
    %v456 = vpop.xlane.xlu0 %455
    %v457 = vsel %vm211, %v451, -inf
    %458 = vmax.xlane.f32.xlu0 %v457
    %v459 = vpop.xlane.xlu0 %458
    %v460 = vsub.f32 %v448, %v456
    %v461 = vsub.f32 %v451, %v459
    %v462 = vmul.f32 %v460, 1.442695
    %v463 = vpow.pop %v462
    %v464 = vmul.f32 %v461, 1.442695
    %v465 = vpow.pop %v464
    %v466 = vsel %vm211, %v463, 0.0
    %467 = vadd.xlane.f32.xlu0 %v466
    %v468 = vpop.xlane.xlu0 %467
    %v469 = vsel %vm211, %v465, 0.0
    %470 = vadd.xlane.f32.xlu0 %v469
    %v471 = vpop.xlane.xlu0 %470
    %v472 = vpack.c.bf16 %v465, %v463
    %473 = vrot.lane.b32.xlu0 %v159, 48
    %v474 = vpop.permute.xlu0 %473
    %v477 = vsel %vm211, %v472, 0
    %479 = vmatprep.subr.bf16.mxu0 0
    %480 = vmatpush1.bf16.msra.mxu0 %v474
    %481 = vmatprep.subr.bf16.mxu0 0
    %482 = vmatpush1.bf16.msra.mxu0 0
    %483 = vmatprep.subr.bf16.mxu0 0
    %484 = vmatpush1.bf16.msra.mxu0 0
    %485 = vmatprep.subr.bf16.mxu0 0
    %486 = vmatpush1.bf16.msra.mxu0 0
    %487 = vmatprep.subr.bf16.mxu0 0
    %488 = vmatpush1.bf16.msra.mxu0 0
    %489 = vmatprep.subr.bf16.mxu0 0
    %490 = vmatpush1.bf16.msra.mxu0 0
    %491 = vmatprep.subr.bf16.mxu0 0
    %492 = vmatpush1.bf16.msra.mxu0 0
    %493 = vmatprep.subr.bf16.mxu0 0
    %494 = vmatpush1.bf16.msra.mxu0 0
    %495 = vmatprep.subr.bf16.mxu0 0
    %496 = vmatpush1.bf16.msra.mxu0 0
    %497 = vmatprep.subr.bf16.mxu0 0
    %498 = vmatpush1.bf16.msra.mxu0 0
    %499 = vmatprep.subr.bf16.mxu0 0
    %500 = vmatpush1.bf16.msra.mxu0 0
    %501 = vmatprep.subr.bf16.mxu0 0
    %502 = vmatpush1.bf16.msra.mxu0 0
    %503 = vmatprep.subr.bf16.mxu0 0
    %504 = vmatpush1.bf16.msra.mxu0 0
    %505 = vmatprep.subr.bf16.mxu0 0
    %506 = vmatpush1.bf16.msra.mxu0 0
    %507 = vmatprep.subr.bf16.mxu0 0
    %508 = vmatpush1.bf16.msra.mxu0 0
    %509 = vmatprep.subr.bf16.mxu0 0
    %510 = vmatpush1.bf16.msra.mxu0 0
    %511 = vmatprep.mubr.bf16.mxu0 0
    %512 = vmatmul.mubr.bf16.gmra.mrb[0].mxu0 %v477
    %v513 = vpop.f32.mrb[0].mxu0
    %v514 = vadd.f32 0.0, %v513
    %v515 = vpop.f32.mrb[0].mxu0
    %v516 = vpop.f32.mrb[0].mxu0
    %v517 = vadd.f32 0.0, %v516
    %v518 = vpop.f32.mrb[0].mxu0
    %519 = vdwg.mxu0
    %v520 = vrcp.pop %v468
    %v521 = vrcp.pop %v471
    %v522 = vmul.f32 %v514, %v520
    %v523 = vmul.f32 %v517, %v521
    %524 = vrot.lane.b32.xlu0 %v159, 104
    %v525 = vpop.permute.xlu0 %524
    %526 = vrot.lane.b32.xlu0 %v159, 72
    %v527 = vpop.permute.xlu0 %526
    %v529 = vsel %vm163, %v525, 0
    %v532 = vsel %vm163, %v527, 0
    %534 = vmatprep.subr.bf16.mxu0 0
    %535 = vmatpush1.bf16.xpose.msra.mxu0 %v532
    %536 = vmatprep.subr.bf16.mxu0 0
    %537 = vmatpush1.bf16.xpose.msra.mxu0 0
    %538 = vmatprep.subr.bf16.mxu0 0
    %539 = vmatpush1.bf16.xpose.msra.mxu0 0
    %540 = vmatprep.subr.bf16.mxu0 0
    %541 = vmatpush1.bf16.xpose.msra.mxu0 0
    %542 = vmatprep.subr.bf16.mxu0 0
    %543 = vmatpush1.bf16.xpose.msra.mxu0 0
    %544 = vmatprep.subr.bf16.mxu0 0
    %545 = vmatpush1.bf16.xpose.msra.mxu0 0
    %546 = vmatprep.subr.bf16.mxu0 0
    %547 = vmatpush1.bf16.xpose.msra.mxu0 0
    %548 = vmatprep.subr.bf16.mxu0 0
    %549 = vmatpush1.bf16.xpose.msra.mxu0 0
    %550 = vmatprep.subr.bf16.mxu0 0
    %551 = vmatpush1.bf16.xpose.msra.mxu0 0
    %552 = vmatprep.subr.bf16.mxu0 0
    %553 = vmatpush1.bf16.xpose.msra.mxu0 0
    %554 = vmatprep.subr.bf16.mxu0 0
    %555 = vmatpush1.bf16.xpose.msra.mxu0 0
    %556 = vmatprep.subr.bf16.mxu0 0
    %557 = vmatpush1.bf16.xpose.msra.mxu0 0
    %558 = vmatprep.subr.bf16.mxu0 0
    %559 = vmatpush1.bf16.xpose.msra.mxu0 0
    %560 = vmatprep.subr.bf16.mxu0 0
    %561 = vmatpush1.bf16.xpose.msra.mxu0 0
    %562 = vmatprep.subr.bf16.mxu0 0
    %563 = vmatpush1.bf16.xpose.msra.mxu0 0
    %564 = vmatprep.subr.bf16.mxu0 0
    %565 = vmatpush1.bf16.xpose.msra.mxu0 0
    %566 = vmatprep.mubr.bf16.mxu0 0
    %567 = vmatmul.mubr.bf16.gmra.mrb[0].mxu0 %v529
    %v568 = vpop.f32.mrb[0].mxu0
    %v569 = vadd.f32 %v36, %v568
    %v570 = vpop.f32.mrb[0].mxu0
    %v571 = vpop.f32.mrb[0].mxu0
    %v572 = vadd.f32 %v37, %v571
    %v573 = vpop.f32.mrb[0].mxu0
    %574 = vdwg.mxu0
    %v575 = vsel %vm211, %v569, -inf
    %576 = vmax.xlane.f32.xlu0 %v575
    %v577 = vpop.xlane.xlu0 %576
    %v578 = vsel %vm211, %v572, -inf
    %579 = vmax.xlane.f32.xlu0 %v578
    %v580 = vpop.xlane.xlu0 %579
    %v581 = vsub.f32 %v569, %v577
    %v582 = vsub.f32 %v572, %v580
    %v583 = vmul.f32 %v581, 1.442695
    %v584 = vpow.pop %v583
    %v585 = vmul.f32 %v582, 1.442695
    %v586 = vpow.pop %v585
    %v587 = vsel %vm211, %v584, 0.0
    %588 = vadd.xlane.f32.xlu0 %v587
    %v589 = vpop.xlane.xlu0 %588
    %v590 = vsel %vm211, %v586, 0.0
    %591 = vadd.xlane.f32.xlu0 %v590
    %v592 = vpop.xlane.xlu0 %591
    %v593 = vpack.c.bf16 %v586, %v584
    %594 = vrot.lane.b32.xlu0 %v159, 40
    %v595 = vpop.permute.xlu0 %594
    %v598 = vsel %vm211, %v593, 0
    %600 = vmatprep.subr.bf16.mxu0 0
    %601 = vmatpush1.bf16.msra.mxu0 %v595
    %602 = vmatprep.subr.bf16.mxu0 0
    %603 = vmatpush1.bf16.msra.mxu0 0
    %604 = vmatprep.subr.bf16.mxu0 0
    %605 = vmatpush1.bf16.msra.mxu0 0
    %606 = vmatprep.subr.bf16.mxu0 0
    %607 = vmatpush1.bf16.msra.mxu0 0
    %608 = vmatprep.subr.bf16.mxu0 0
    %609 = vmatpush1.bf16.msra.mxu0 0
    %610 = vmatprep.subr.bf16.mxu0 0
    %611 = vmatpush1.bf16.msra.mxu0 0
    %612 = vmatprep.subr.bf16.mxu0 0
    %613 = vmatpush1.bf16.msra.mxu0 0
    %614 = vmatprep.subr.bf16.mxu0 0
    %615 = vmatpush1.bf16.msra.mxu0 0
    %616 = vmatprep.subr.bf16.mxu0 0
    %617 = vmatpush1.bf16.msra.mxu0 0
    %618 = vmatprep.subr.bf16.mxu0 0
    %619 = vmatpush1.bf16.msra.mxu0 0
    %620 = vmatprep.subr.bf16.mxu0 0
    %621 = vmatpush1.bf16.msra.mxu0 0
    %622 = vmatprep.subr.bf16.mxu0 0
    %623 = vmatpush1.bf16.msra.mxu0 0
    %624 = vmatprep.subr.bf16.mxu0 0
    %625 = vmatpush1.bf16.msra.mxu0 0
    %626 = vmatprep.subr.bf16.mxu0 0
    %627 = vmatpush1.bf16.msra.mxu0 0
    %628 = vmatprep.subr.bf16.mxu0 0
    %629 = vmatpush1.bf16.msra.mxu0 0
    %630 = vmatprep.subr.bf16.mxu0 0
    %631 = vmatpush1.bf16.msra.mxu0 0
    %632 = vmatprep.mubr.bf16.mxu0 0
    %633 = vmatmul.mubr.bf16.gmra.mrb[0].mxu0 %v598
    %v634 = vpop.f32.mrb[0].mxu0
    %v635 = vadd.f32 0.0, %v634
    %v636 = vpop.f32.mrb[0].mxu0
    %v637 = vpop.f32.mrb[0].mxu0
    %v638 = vadd.f32 0.0, %v637
    %v639 = vpop.f32.mrb[0].mxu0
    %640 = vdwg.mxu0
    %v641 = vrcp.pop %v589
    %v642 = vrcp.pop %v592
    %v643 = vmul.f32 %v635, %v641
    %v644 = vmul.f32 %v638, %v642
    %647 = vrot.lane.b32.xlu0 %v401, 8
    %v648 = vpop.permute.xlu0 %647
    %649 = vrot.lane.b32.xlu0 %v402, 8
    %v650 = vpop.permute.xlu0 %649
    %655 = vrot.lane.b32.xlu0 %v522, 16
    %v656 = vpop.permute.xlu0 %655
    %657 = vrot.lane.b32.xlu0 %v523, 16
    %v658 = vpop.permute.xlu0 %657
    %663 = vrot.lane.b32.xlu0 %v643, 24
    %v664 = vpop.permute.xlu0 %663
    %665 = vrot.lane.b32.xlu0 %v644, 24
    %v666 = vpop.permute.xlu0 %665
    %v669 = vsel %vm163, %v280, %v648
    %v670 = vsel %vm163, %v281, %v650
    %v671 = vsel %vm211, %v669, %v656
    %v672 = vsel %vm211, %v670, %v658
    %vm673 = vcmask 195584
    %v674 = vsel %vm673, %v671, %v664
    %v675 = vsel %vm673, %v672, %v666
    %v676 = vld [vmem:[%s5] sm:$0xf]
    %v677 = vld [vmem:[%s5 + $0x4] sm:$0xf]
    %v678 = vld [vmem:[%s5 + $0x8] sm:$0xf]
    %v679 = vld [vmem:[%s5 + $0xc] sm:$0xf]
    %v680 = vpack.c.bf16 %v675, %v674
    %v685 = vunpack.c.l.b16 %v676
    %v686 = vunpack.c.l.b16 %v677
    %v687 = vunpack.c.l.b16 %v678
    %v688 = vunpack.c.l.b16 %v679
    %v689 = vpack.c.b16 %v686, %v685
    %v690 = vpack.c.b16 %v688, %v687
    %v694 = vsel %vm44, %v680, 0
    %696 = vmatprep.subr.bf16.mxu0 0
    %697 = vmatpush1.bf16.msra.mxu0 %v689
    %698 = vmatprep.subr.bf16.mxu0 0
    %699 = vmatpush1.bf16.msra.mxu0 %v690
    %700 = vmatprep.subr.bf16.mxu0 0
    %701 = vmatpush1.bf16.msra.mxu0 0
    %702 = vmatprep.subr.bf16.mxu0 0
    %703 = vmatpush1.bf16.msra.mxu0 0
    %704 = vmatprep.subr.bf16.mxu0 0
    %705 = vmatpush1.bf16.msra.mxu0 0
    %706 = vmatprep.subr.bf16.mxu0 0
    %707 = vmatpush1.bf16.msra.mxu0 0
    %708 = vmatprep.subr.bf16.mxu0 0
    %709 = vmatpush1.bf16.msra.mxu0 0
    %710 = vmatprep.subr.bf16.mxu0 0
    %711 = vmatpush1.bf16.msra.mxu0 0
    %712 = vmatprep.subr.bf16.mxu0 0
    %713 = vmatpush1.bf16.msra.mxu0 0
    %714 = vmatprep.subr.bf16.mxu0 0
    %715 = vmatpush1.bf16.msra.mxu0 0
    %716 = vmatprep.subr.bf16.mxu0 0
    %717 = vmatpush1.bf16.msra.mxu0 0
    %718 = vmatprep.subr.bf16.mxu0 0
    %719 = vmatpush1.bf16.msra.mxu0 0
    %720 = vmatprep.subr.bf16.mxu0 0
    %721 = vmatpush1.bf16.msra.mxu0 0
    %722 = vmatprep.subr.bf16.mxu0 0
    %723 = vmatpush1.bf16.msra.mxu0 0
    %724 = vmatprep.subr.bf16.mxu0 0
    %725 = vmatpush1.bf16.msra.mxu0 0
    %726 = vmatprep.subr.bf16.mxu0 0
    %727 = vmatpush1.bf16.msra.mxu0 0
    %728 = vmatprep.mubr.bf16.mxu0 0
    %729 = vmatmul.mubr.bf16.gmra.mrb[0].mxu0 %v694
    %v730 = vpop.f32.mrb[0].mxu0
    %v731 = vadd.f32 0.0, %v730
    %v732 = vpop.f32.mrb[0].mxu0
    %v733 = vpop.f32.mrb[0].mxu0
    %v734 = vadd.f32 0.0, %v733
    %v735 = vpop.f32.mrb[0].mxu0
    %736 = vdwg.mxu0
    %v737 = vadd.f32 %v34, %v731
    %v738 = vadd.f32 %v35, %v734
    %v739 = vlaneseq
    %v740 = vshrl.u32 %v739, 7
    %v741 = vsub.s32 0, %v740
    %v742 = vrot.slane %v40, %v741
    %v743 = vadd.f32 %v737, %v742
    %v744 = vadd.f32 %v738, %v742
    %v745 = vsel %vm44, %v743, 0.0
    %746 = vadd.xlane.f32.xlu0 %v745
    %v747 = vpop.xlane.xlu0 %746
    %v748 = vsel %vm44, %v744, 0.0
    %749 = vadd.xlane.f32.xlu0 %v748
    %v750 = vpop.xlane.xlu0 %749
    %v751 = vmul.f32 %v747, %v51
    %v752 = vmul.f32 %v750, %v51
    %v753 = vsub.f32 %v743, %v751
    %v754 = vsub.f32 %v744, %v752
    %v755 = vmul.f32 %v753, %v753
    %v756 = vmul.f32 %v754, %v754
    %v757 = vsel %vm44, %v755, 0.0
    %758 = vadd.xlane.f32.xlu0 %v757
    %v759 = vpop.xlane.xlu0 %758
    %v760 = vsel %vm44, %v756, 0.0
    %761 = vadd.xlane.f32.xlu0 %v760
    %v762 = vpop.xlane.xlu0 %761
    %v763 = vmul.f32 %v759, %v51
    %v764 = vmul.f32 %v762, %v51
    %v765 = vrsqrt.pop %v763
    %v766 = vmul.f32 %v763, %v765
    %vm767 = vcmp.eq.f32.partialorder %v763, inf
    %v768 = vsel %vm767, %v763, %v766
    %vm769 = vcmp.eq.f32.partialorder %v763, 0.0
    %v770 = vand.u32 %v763, 2147483648
    %v771 = vsel %vm769, %v770, %v768
    %v772 = vrsqrt.pop %v764
    %v773 = vmul.f32 %v764, %v772
    %vm774 = vcmp.eq.f32.partialorder %v764, inf
    %v775 = vsel %vm774, %v764, %v773
    %vm776 = vcmp.eq.f32.partialorder %v764, 0.0
    %v777 = vand.u32 %v764, 2147483648
    %v778 = vsel %vm776, %v777, %v775
    %v779 = vadd.f32 %v771, 1e-05
    %v780 = vadd.f32 %v778, 1e-05
    %v781 = vrcp.pop %v779
    %v782 = vrcp.pop %v780
    %v783 = vmul.f32 %v753, %v781
    %v784 = vmul.f32 %v754, %v782
    %v785 = vlaneseq
    %v786 = vshrl.u32 %v785, 7
    %v787 = vsub.s32 0, %v786
    %v788 = vrot.slane %v41, %v787
    %v789 = vmul.f32 %v788, %v783
    %v790 = vmul.f32 %v788, %v784
    %v791 = vlaneseq
    %v792 = vshrl.u32 %v791, 7
    %v793 = vsub.s32 0, %v792
    %v794 = vrot.slane %v42, %v793
    %v795 = vadd.f32 %v789, %v794
    %v796 = vadd.f32 %v790, %v794
    %v797 = vld [vmem:[%s6] sm:$0xf]
    %v798 = vld [vmem:[%s6 + $0x4] sm:$0xf]
    %v799 = vld [vmem:[%s6 + $0x8] sm:$0xf]
    %v800 = vld [vmem:[%s6 + $0xc] sm:$0xf]
    %v801 = vpack.c.bf16 %v796, %v795
    %v802 = vld [vmem:[%s3] sm:$0x1]
    %v803 = vlaneseq
    %v804 = vshrl.u32 %v803, 7
    %v805 = vsub.s32 0, %v804
    %v806 = vrot.slane %v802, %v805
    %v811 = vunpack.c.l.b16 %v797
    %v812 = vunpack.c.l.b16 %v798
    %v813 = vunpack.c.l.b16 %v799
    %v814 = vunpack.c.l.b16 %v800
    %v815 = vpack.c.b16 %v812, %v811
    %v816 = vpack.c.b16 %v814, %v813
    %v820 = vsel %vm44, %v801, 0
    %822 = vmatprep.subr.bf16.mxu0 0
    %823 = vmatpush1.bf16.msra.mxu0 %v815
    %824 = vmatprep.subr.bf16.mxu0 0
    %825 = vmatpush1.bf16.msra.mxu0 %v816
    %826 = vmatprep.subr.bf16.mxu0 0
    %827 = vmatpush1.bf16.msra.mxu0 0
    %828 = vmatprep.subr.bf16.mxu0 0
    %829 = vmatpush1.bf16.msra.mxu0 0
    %830 = vmatprep.subr.bf16.mxu0 0
    %831 = vmatpush1.bf16.msra.mxu0 0
    %832 = vmatprep.subr.bf16.mxu0 0
    %833 = vmatpush1.bf16.msra.mxu0 0
    %834 = vmatprep.subr.bf16.mxu0 0
    %835 = vmatpush1.bf16.msra.mxu0 0
    %836 = vmatprep.subr.bf16.mxu0 0
    %837 = vmatpush1.bf16.msra.mxu0 0
    %838 = vmatprep.subr.bf16.mxu0 0
    %839 = vmatpush1.bf16.msra.mxu0 0
    %840 = vmatprep.subr.bf16.mxu0 0
    %841 = vmatpush1.bf16.msra.mxu0 0
    %842 = vmatprep.subr.bf16.mxu0 0
    %843 = vmatpush1.bf16.msra.mxu0 0
    %844 = vmatprep.subr.bf16.mxu0 0
    %845 = vmatpush1.bf16.msra.mxu0 0
    %846 = vmatprep.subr.bf16.mxu0 0
    %847 = vmatpush1.bf16.msra.mxu0 0
    %848 = vmatprep.subr.bf16.mxu0 0
    %849 = vmatpush1.bf16.msra.mxu0 0
    %850 = vmatprep.subr.bf16.mxu0 0
    %851 = vmatpush1.bf16.msra.mxu0 0
    %852 = vmatprep.subr.bf16.mxu0 0
    %853 = vmatpush1.bf16.msra.mxu0 0
    %854 = vmatprep.mubr.bf16.mxu0 0
    %855 = vmatmul.mubr.bf16.gmra.mrb[0].mxu0 %v820
    %v856 = vpop.f32.mrb[0].mxu0
    %v857 = vadd.f32 %v806, %v856
    %v858 = vpop.f32.mrb[0].mxu0
    %v859 = vpop.f32.mrb[0].mxu0
    %v860 = vadd.f32 %v806, %v859
    %v861 = vpop.f32.mrb[0].mxu0
    %862 = vdwg.mxu0
    %v863 = vmul.f32 %v857, 0.5
    %v864 = vmul.f32 %v860, 0.5
    %v865 = vmul.f32 %v857, %v857
    %v866 = vmul.f32 %v860, %v860
    %v867 = vmul.f32 %v857, %v865
    %v868 = vmul.f32 %v860, %v866
    %v869 = vmul.f32 %v867, 0.044715
    %v870 = vmul.f32 %v868, 0.044715
    %v871 = vadd.f32 %v857, %v869
    %v872 = vadd.f32 %v860, %v870
    %v873 = vmul.f32 %v871, 0.7978846
    %v874 = vmul.f32 %v872, 0.7978846
    %v875 = vtanh.pop %v873
    %v876 = vtanh.pop %v874
    %v877 = vadd.f32 %v875, 1.0
    %v878 = vadd.f32 %v876, 1.0
    %v879 = vmul.f32 %v863, %v877
    %v880 = vmul.f32 %v864, %v878
    %v881 = vld [vmem:[%s7] sm:$0xf]
    %v882 = vld [vmem:[%s7 + $0x4] sm:$0xf]
    %v883 = vld [vmem:[%s7 + $0x8] sm:$0xf]
    %v884 = vld [vmem:[%s7 + $0xc] sm:$0xf]
    %v885 = vld [vmem:[%s7 + $0x10] sm:$0xf]
    %v886 = vld [vmem:[%s7 + $0x14] sm:$0xf]
    %v887 = vld [vmem:[%s7 + $0x18] sm:$0xf]
    %v888 = vld [vmem:[%s7 + $0x1c] sm:$0xf]
    %v889 = vld [vmem:[%s7 + $0x20] sm:$0xf]
    %v890 = vld [vmem:[%s7 + $0x24] sm:$0xf]
    %v891 = vld [vmem:[%s7 + $0x28] sm:$0xf]
    %v892 = vld [vmem:[%s7 + $0x2c] sm:$0xf]
    %v893 = vld [vmem:[%s7 + $0x30] sm:$0xf]
    %v894 = vld [vmem:[%s7 + $0x34] sm:$0xf]
    %v895 = vld [vmem:[%s7 + $0x38] sm:$0xf]
    %v896 = vld [vmem:[%s7 + $0x3c] sm:$0xf]
    %v897 = vpack.c.bf16 %v880, %v879
    %v914 = vunpack.c.l.b16 %v881
    %v915 = vunpack.c.l.b16 %v882
    %v916 = vunpack.c.l.b16 %v883
    %v917 = vunpack.c.l.b16 %v884
    %v918 = vunpack.c.l.b16 %v885
    %v919 = vunpack.c.l.b16 %v886
    %v920 = vunpack.c.l.b16 %v887
    %v921 = vunpack.c.l.b16 %v888
    %v922 = vunpack.c.l.b16 %v889
    %v923 = vunpack.c.l.b16 %v890
    %v924 = vunpack.c.l.b16 %v891
    %v925 = vunpack.c.l.b16 %v892
    %v926 = vunpack.c.l.b16 %v893
    %v927 = vunpack.c.l.b16 %v894
    %v928 = vunpack.c.l.b16 %v895
    %v929 = vunpack.c.l.b16 %v896
    %v930 = vpack.c.b16 %v915, %v914
    %v931 = vpack.c.b16 %v917, %v916
    %v932 = vpack.c.b16 %v919, %v918
    %v933 = vpack.c.b16 %v921, %v920
    %v934 = vpack.c.b16 %v923, %v922
    %v935 = vpack.c.b16 %v925, %v924
    %v936 = vpack.c.b16 %v927, %v926
    %v937 = vpack.c.b16 %v929, %v928
    %946 = vmatprep.subr.bf16.mxu0 0
    %947 = vmatpush1.bf16.msra.mxu0 %v930
    %948 = vmatprep.subr.bf16.mxu0 0
    %949 = vmatpush1.bf16.msra.mxu0 %v931
    %950 = vmatprep.subr.bf16.mxu0 0
    %951 = vmatpush1.bf16.msra.mxu0 %v932
    %952 = vmatprep.subr.bf16.mxu0 0
    %953 = vmatpush1.bf16.msra.mxu0 %v933
    %954 = vmatprep.subr.bf16.mxu0 0
    %955 = vmatpush1.bf16.msra.mxu0 %v934
    %956 = vmatprep.subr.bf16.mxu0 0
    %957 = vmatpush1.bf16.msra.mxu0 %v935
    %958 = vmatprep.subr.bf16.mxu0 0
    %959 = vmatpush1.bf16.msra.mxu0 %v936
    %960 = vmatprep.subr.bf16.mxu0 0
    %961 = vmatpush1.bf16.msra.mxu0 %v937
    %962 = vmatprep.subr.bf16.mxu0 0
    %963 = vmatpush1.bf16.msra.mxu0 0
    %964 = vmatprep.subr.bf16.mxu0 0
    %965 = vmatpush1.bf16.msra.mxu0 0
    %966 = vmatprep.subr.bf16.mxu0 0
    %967 = vmatpush1.bf16.msra.mxu0 0
    %968 = vmatprep.subr.bf16.mxu0 0
    %969 = vmatpush1.bf16.msra.mxu0 0
    %970 = vmatprep.subr.bf16.mxu0 0
    %971 = vmatpush1.bf16.msra.mxu0 0
    %972 = vmatprep.subr.bf16.mxu0 0
    %973 = vmatpush1.bf16.msra.mxu0 0
    %974 = vmatprep.subr.bf16.mxu0 0
    %975 = vmatpush1.bf16.msra.mxu0 0
    %976 = vmatprep.subr.bf16.mxu0 0
    %977 = vmatpush1.bf16.msra.mxu0 0
    %978 = vmatprep.mubr.bf16.mxu0 0
    %979 = vmatmul.mubr.bf16.gmra.mrb[0].mxu0 %v897
    %v980 = vpop.f32.mrb[0].mxu0
    %v981 = vadd.f32 0.0, %v980
    %v982 = vpop.f32.mrb[0].mxu0
    %v983 = vpop.f32.mrb[0].mxu0
    %v984 = vadd.f32 0.0, %v983
    %v985 = vpop.f32.mrb[0].mxu0
    %986 = vdwg.mxu0
    %v987 = vadd.f32 %v743, %v981
    %v988 = vadd.f32 %v744, %v984
    %v989 = vlaneseq
    %v990 = vshrl.u32 %v989, 7
    %v991 = vsub.s32 0, %v990
    %v992 = vrot.slane %v43, %v991
    %v993 = vadd.f32 %v987, %v992
    %v994 = vadd.f32 %v988, %v992
    %v995 = vld [vmem:[%s2 + $0x6] sm:$0x1]
    %v996 = vld [vmem:[%s2 + $0x7] sm:$0x1]
    %v997 = vld [vmem:[%s2 + $0x8] sm:$0x1]
    %v998 = vld [vmem:[%s2 + $0x9] sm:$0x1]
    %v999 = vld [vmem:[%s2 + $0xa] sm:$0x1]
    %v1000 = vld [vmem:[%s2 + $0xb] sm:$0x1]
    %v1001 = vsel %vm44, %v993, 0.0
    %1002 = vadd.xlane.f32.xlu0 %v1001
    %v1003 = vpop.xlane.xlu0 %1002
    %v1004 = vsel %vm44, %v994, 0.0
    %1005 = vadd.xlane.f32.xlu0 %v1004
    %v1006 = vpop.xlane.xlu0 %1005
    %v1007 = vmul.f32 %v1003, %v51
    %v1008 = vmul.f32 %v1006, %v51
    %v1009 = vsub.f32 %v993, %v1007
    %v1010 = vsub.f32 %v994, %v1008
    %v1011 = vmul.f32 %v1009, %v1009
    %v1012 = vmul.f32 %v1010, %v1010
    %v1013 = vsel %vm44, %v1011, 0.0
    %1014 = vadd.xlane.f32.xlu0 %v1013
    %v1015 = vpop.xlane.xlu0 %1014
    %v1016 = vsel %vm44, %v1012, 0.0
    %1017 = vadd.xlane.f32.xlu0 %v1016
    %v1018 = vpop.xlane.xlu0 %1017
    %v1019 = vmul.f32 %v1015, %v51
    %v1020 = vmul.f32 %v1018, %v51
    %v1021 = vrsqrt.pop %v1019
    %v1022 = vmul.f32 %v1019, %v1021
    %vm1023 = vcmp.eq.f32.partialorder %v1019, inf
    %v1024 = vsel %vm1023, %v1019, %v1022
    %vm1025 = vcmp.eq.f32.partialorder %v1019, 0.0
    %v1026 = vand.u32 %v1019, 2147483648
    %v1027 = vsel %vm1025, %v1026, %v1024
    %v1028 = vrsqrt.pop %v1020
    %v1029 = vmul.f32 %v1020, %v1028
    %vm1030 = vcmp.eq.f32.partialorder %v1020, inf
    %v1031 = vsel %vm1030, %v1020, %v1029
    %vm1032 = vcmp.eq.f32.partialorder %v1020, 0.0
    %v1033 = vand.u32 %v1020, 2147483648
    %v1034 = vsel %vm1032, %v1033, %v1031
    %v1035 = vadd.f32 %v1027, 1e-05
    %v1036 = vadd.f32 %v1034, 1e-05
    %v1037 = vrcp.pop %v1035
    %v1038 = vrcp.pop %v1036
    %v1039 = vmul.f32 %v1009, %v1037
    %v1040 = vmul.f32 %v1010, %v1038
    %v1041 = vlaneseq
    %v1042 = vshrl.u32 %v1041, 7
    %v1043 = vsub.s32 0, %v1042
    %v1044 = vrot.slane %v995, %v1043
    %v1045 = vmul.f32 %v1044, %v1039
    %v1046 = vmul.f32 %v1044, %v1040
    %v1047 = vlaneseq
    %v1048 = vshrl.u32 %v1047, 7
    %v1049 = vsub.s32 0, %v1048
    %v1050 = vrot.slane %v996, %v1049
    %v1051 = vadd.f32 %v1045, %v1050
    %v1052 = vadd.f32 %v1046, %v1050
    %s1053 = scalar_lea.vmem %s4, 16
    %v1054 = vld [vmem:[%s1053] sm:$0xf]
    %v1055 = vld [vmem:[%s1053 + $0x4] sm:$0xf]
    %v1056 = vld [vmem:[%s1053 + $0x8] sm:$0xf]
    %v1057 = vld [vmem:[%s1053 + $0xc] sm:$0xf]
    %v1058 = vpack.c.bf16 %v1052, %v1051
    %v1063 = vunpack.c.l.b16 %v1054
    %v1064 = vunpack.c.l.b16 %v1055
    %v1065 = vunpack.c.l.b16 %v1056
    %v1066 = vunpack.c.l.b16 %v1057
    %v1067 = vpack.c.b16 %v1064, %v1063
    %v1068 = vpack.c.b16 %v1066, %v1065
    %v1072 = vsel %vm44, %v1058, 0
    %1074 = vmatprep.subr.bf16.mxu0 0
    %1075 = vmatpush1.bf16.msra.mxu0 %v1067
    %1076 = vmatprep.subr.bf16.mxu0 0
    %1077 = vmatpush1.bf16.msra.mxu0 %v1068
    %1078 = vmatprep.subr.bf16.mxu0 0
    %1079 = vmatpush1.bf16.msra.mxu0 0
    %1080 = vmatprep.subr.bf16.mxu0 0
    %1081 = vmatpush1.bf16.msra.mxu0 0
    %1082 = vmatprep.subr.bf16.mxu0 0
    %1083 = vmatpush1.bf16.msra.mxu0 0
    %1084 = vmatprep.subr.bf16.mxu0 0
    %1085 = vmatpush1.bf16.msra.mxu0 0
    %1086 = vmatprep.subr.bf16.mxu0 0
    %1087 = vmatpush1.bf16.msra.mxu0 0
    %1088 = vmatprep.subr.bf16.mxu0 0
    %1089 = vmatpush1.bf16.msra.mxu0 0
    %1090 = vmatprep.subr.bf16.mxu0 0
    %1091 = vmatpush1.bf16.msra.mxu0 0
    %1092 = vmatprep.subr.bf16.mxu0 0
    %1093 = vmatpush1.bf16.msra.mxu0 0
    %1094 = vmatprep.subr.bf16.mxu0 0
    %1095 = vmatpush1.bf16.msra.mxu0 0
    %1096 = vmatprep.subr.bf16.mxu0 0
    %1097 = vmatpush1.bf16.msra.mxu0 0
    %1098 = vmatprep.subr.bf16.mxu0 0
    %1099 = vmatpush1.bf16.msra.mxu0 0
    %1100 = vmatprep.subr.bf16.mxu0 0
    %1101 = vmatpush1.bf16.msra.mxu0 0
    %1102 = vmatprep.subr.bf16.mxu0 0
    %1103 = vmatpush1.bf16.msra.mxu0 0
    %1104 = vmatprep.subr.bf16.mxu0 0
    %1105 = vmatpush1.bf16.msra.mxu0 0
    %1106 = vmatprep.mubr.bf16.mxu0 0
    %1107 = vmatmul.mubr.bf16.gmra.mrb[0].mxu0 %v1072
    %v1108 = vpop.f32.mrb[0].mxu0
    %v1109 = vadd.f32 0.0, %v1108
    %v1110 = vpop.f32.mrb[0].mxu0
    %v1111 = vpop.f32.mrb[0].mxu0
    %v1112 = vadd.f32 0.0, %v1111
    %v1113 = vpop.f32.mrb[0].mxu0
    %1114 = vdwg.mxu0
    %v1115 = vpack.c.bf16 %v1112, %v1109
    %1117 = vrot.lane.b32.xlu0 %v1115, 96
    %v1118 = vpop.permute.xlu0 %1117
    %v1120 = vsel %vm163, %v1115, 0
    %v1123 = vsel %vm163, %v1118, 0
    %1125 = vmatprep.subr.bf16.mxu0 0
    %1126 = vmatpush1.bf16.xpose.msra.mxu0 %v1123
    %1127 = vmatprep.subr.bf16.mxu0 0
    %1128 = vmatpush1.bf16.xpose.msra.mxu0 0
    %1129 = vmatprep.subr.bf16.mxu0 0
    %1130 = vmatpush1.bf16.xpose.msra.mxu0 0
    %1131 = vmatprep.subr.bf16.mxu0 0
    %1132 = vmatpush1.bf16.xpose.msra.mxu0 0
    %1133 = vmatprep.subr.bf16.mxu0 0
    %1134 = vmatpush1.bf16.xpose.msra.mxu0 0
    %1135 = vmatprep.subr.bf16.mxu0 0
    %1136 = vmatpush1.bf16.xpose.msra.mxu0 0
    %1137 = vmatprep.subr.bf16.mxu0 0
    %1138 = vmatpush1.bf16.xpose.msra.mxu0 0
    %1139 = vmatprep.subr.bf16.mxu0 0
    %1140 = vmatpush1.bf16.xpose.msra.mxu0 0
    %1141 = vmatprep.subr.bf16.mxu0 0
    %1142 = vmatpush1.bf16.xpose.msra.mxu0 0
    %1143 = vmatprep.subr.bf16.mxu0 0
    %1144 = vmatpush1.bf16.xpose.msra.mxu0 0
    %1145 = vmatprep.subr.bf16.mxu0 0
    %1146 = vmatpush1.bf16.xpose.msra.mxu0 0
    %1147 = vmatprep.subr.bf16.mxu0 0
    %1148 = vmatpush1.bf16.xpose.msra.mxu0 0
    %1149 = vmatprep.subr.bf16.mxu0 0
    %1150 = vmatpush1.bf16.xpose.msra.mxu0 0
    %1151 = vmatprep.subr.bf16.mxu0 0
    %1152 = vmatpush1.bf16.xpose.msra.mxu0 0
    %1153 = vmatprep.subr.bf16.mxu0 0
    %1154 = vmatpush1.bf16.xpose.msra.mxu0 0
    %1155 = vmatprep.subr.bf16.mxu0 0
    %1156 = vmatpush1.bf16.xpose.msra.mxu0 0
    %1157 = vmatprep.mubr.bf16.mxu0 0
    %1158 = vmatmul.mubr.bf16.gmra.mrb[0].mxu0 %v1120
    %v1159 = vpop.f32.mrb[0].mxu0
    %v1160 = vadd.f32 %v36, %v1159
    %v1161 = vpop.f32.mrb[0].mxu0
    %v1162 = vpop.f32.mrb[0].mxu0
    %v1163 = vadd.f32 %v37, %v1162
    %v1164 = vpop.f32.mrb[0].mxu0
    %1165 = vdwg.mxu0
    %v1166 = vsel %vm211, %v1160, -inf
    %1167 = vmax.xlane.f32.xlu0 %v1166
    %v1168 = vpop.xlane.xlu0 %1167
    %v1169 = vsel %vm211, %v1163, -inf
    %1170 = vmax.xlane.f32.xlu0 %v1169
    %v1171 = vpop.xlane.xlu0 %1170
    %v1172 = vsub.f32 %v1160, %v1168
    %v1173 = vsub.f32 %v1163, %v1171
    %v1174 = vmul.f32 %v1172, 1.442695
    %v1175 = vpow.pop %v1174
    %v1176 = vmul.f32 %v1173, 1.442695
    %v1177 = vpow.pop %v1176
    %v1178 = vsel %vm211, %v1175, 0.0
    %1179 = vadd.xlane.f32.xlu0 %v1178
    %v1180 = vpop.xlane.xlu0 %1179
    %v1181 = vsel %vm211, %v1177, 0.0
    %1182 = vadd.xlane.f32.xlu0 %v1181
    %v1183 = vpop.xlane.xlu0 %1182
    %v1184 = vpack.c.bf16 %v1177, %v1175
    %1185 = vrot.lane.b32.xlu0 %v1115, 64
    %v1186 = vpop.permute.xlu0 %1185
    %v1189 = vsel %vm211, %v1184, 0
    %1191 = vmatprep.subr.bf16.mxu0 0
    %1192 = vmatpush1.bf16.msra.mxu0 %v1186
    %1193 = vmatprep.subr.bf16.mxu0 0
    %1194 = vmatpush1.bf16.msra.mxu0 0
    %1195 = vmatprep.subr.bf16.mxu0 0
    %1196 = vmatpush1.bf16.msra.mxu0 0
    %1197 = vmatprep.subr.bf16.mxu0 0
    %1198 = vmatpush1.bf16.msra.mxu0 0
    %1199 = vmatprep.subr.bf16.mxu0 0
    %1200 = vmatpush1.bf16.msra.mxu0 0
    %1201 = vmatprep.subr.bf16.mxu0 0
    %1202 = vmatpush1.bf16.msra.mxu0 0
    %1203 = vmatprep.subr.bf16.mxu0 0
    %1204 = vmatpush1.bf16.msra.mxu0 0
    %1205 = vmatprep.subr.bf16.mxu0 0
    %1206 = vmatpush1.bf16.msra.mxu0 0
    %1207 = vmatprep.subr.bf16.mxu0 0
    %1208 = vmatpush1.bf16.msra.mxu0 0
    %1209 = vmatprep.subr.bf16.mxu0 0
    %1210 = vmatpush1.bf16.msra.mxu0 0
    %1211 = vmatprep.subr.bf16.mxu0 0
    %1212 = vmatpush1.bf16.msra.mxu0 0
    %1213 = vmatprep.subr.bf16.mxu0 0
    %1214 = vmatpush1.bf16.msra.mxu0 0
    %1215 = vmatprep.subr.bf16.mxu0 0
    %1216 = vmatpush1.bf16.msra.mxu0 0
    %1217 = vmatprep.subr.bf16.mxu0 0
    %1218 = vmatpush1.bf16.msra.mxu0 0
    %1219 = vmatprep.subr.bf16.mxu0 0
    %1220 = vmatpush1.bf16.msra.mxu0 0
    %1221 = vmatprep.subr.bf16.mxu0 0
    %1222 = vmatpush1.bf16.msra.mxu0 0
    %1223 = vmatprep.mubr.bf16.mxu0 0
    %1224 = vmatmul.mubr.bf16.gmra.mrb[0].mxu0 %v1189
    %v1225 = vpop.f32.mrb[0].mxu0
    %v1226 = vadd.f32 0.0, %v1225
    %v1227 = vpop.f32.mrb[0].mxu0
    %v1228 = vpop.f32.mrb[0].mxu0
    %v1229 = vadd.f32 0.0, %v1228
    %v1230 = vpop.f32.mrb[0].mxu0
    %1231 = vdwg.mxu0
    %v1232 = vrcp.pop %v1180
    %v1233 = vrcp.pop %v1183
    %v1234 = vmul.f32 %v1226, %v1232
    %v1235 = vmul.f32 %v1229, %v1233
    %1236 = vrot.lane.b32.xlu0 %v1115, 120
    %v1237 = vpop.permute.xlu0 %1236
    %1238 = vrot.lane.b32.xlu0 %v1115, 88
    %v1239 = vpop.permute.xlu0 %1238
    %v1241 = vsel %vm163, %v1237, 0
    %v1244 = vsel %vm163, %v1239, 0
    %1246 = vmatprep.subr.bf16.mxu0 0
    %1247 = vmatpush1.bf16.xpose.msra.mxu0 %v1244
    %1248 = vmatprep.subr.bf16.mxu0 0
    %1249 = vmatpush1.bf16.xpose.msra.mxu0 0
    %1250 = vmatprep.subr.bf16.mxu0 0
    %1251 = vmatpush1.bf16.xpose.msra.mxu0 0
    %1252 = vmatprep.subr.bf16.mxu0 0
    %1253 = vmatpush1.bf16.xpose.msra.mxu0 0
    %1254 = vmatprep.subr.bf16.mxu0 0
    %1255 = vmatpush1.bf16.xpose.msra.mxu0 0
    %1256 = vmatprep.subr.bf16.mxu0 0
    %1257 = vmatpush1.bf16.xpose.msra.mxu0 0
    %1258 = vmatprep.subr.bf16.mxu0 0
    %1259 = vmatpush1.bf16.xpose.msra.mxu0 0
    %1260 = vmatprep.subr.bf16.mxu0 0
    %1261 = vmatpush1.bf16.xpose.msra.mxu0 0
    %1262 = vmatprep.subr.bf16.mxu0 0
    %1263 = vmatpush1.bf16.xpose.msra.mxu0 0
    %1264 = vmatprep.subr.bf16.mxu0 0
    %1265 = vmatpush1.bf16.xpose.msra.mxu0 0
    %1266 = vmatprep.subr.bf16.mxu0 0
    %1267 = vmatpush1.bf16.xpose.msra.mxu0 0
    %1268 = vmatprep.subr.bf16.mxu0 0
    %1269 = vmatpush1.bf16.xpose.msra.mxu0 0
    %1270 = vmatprep.subr.bf16.mxu0 0
    %1271 = vmatpush1.bf16.xpose.msra.mxu0 0
    %1272 = vmatprep.subr.bf16.mxu0 0
    %1273 = vmatpush1.bf16.xpose.msra.mxu0 0
    %1274 = vmatprep.subr.bf16.mxu0 0
    %1275 = vmatpush1.bf16.xpose.msra.mxu0 0
    %1276 = vmatprep.subr.bf16.mxu0 0
    %1277 = vmatpush1.bf16.xpose.msra.mxu0 0
    %1278 = vmatprep.mubr.bf16.mxu0 0
    %1279 = vmatmul.mubr.bf16.gmra.mrb[0].mxu0 %v1241
    %v1280 = vpop.f32.mrb[0].mxu0
    %v1281 = vadd.f32 %v36, %v1280
    %v1282 = vpop.f32.mrb[0].mxu0
    %v1283 = vpop.f32.mrb[0].mxu0
    %v1284 = vadd.f32 %v37, %v1283
    %v1285 = vpop.f32.mrb[0].mxu0
    %1286 = vdwg.mxu0
    %v1287 = vsel %vm211, %v1281, -inf
    %1288 = vmax.xlane.f32.xlu0 %v1287
    %v1289 = vpop.xlane.xlu0 %1288
    %v1290 = vsel %vm211, %v1284, -inf
    %1291 = vmax.xlane.f32.xlu0 %v1290
    %v1292 = vpop.xlane.xlu0 %1291
    %v1293 = vsub.f32 %v1281, %v1289
    %v1294 = vsub.f32 %v1284, %v1292
    %v1295 = vmul.f32 %v1293, 1.442695
    %v1296 = vpow.pop %v1295
    %v1297 = vmul.f32 %v1294, 1.442695
    %v1298 = vpow.pop %v1297
    %v1299 = vsel %vm211, %v1296, 0.0
    %1300 = vadd.xlane.f32.xlu0 %v1299
    %v1301 = vpop.xlane.xlu0 %1300
    %v1302 = vsel %vm211, %v1298, 0.0
    %1303 = vadd.xlane.f32.xlu0 %v1302
    %v1304 = vpop.xlane.xlu0 %1303
    %v1305 = vpack.c.bf16 %v1298, %v1296
    %1306 = vrot.lane.b32.xlu0 %v1115, 56
    %v1307 = vpop.permute.xlu0 %1306
    %v1310 = vsel %vm211, %v1305, 0
    %1312 = vmatprep.subr.bf16.mxu0 0
    %1313 = vmatpush1.bf16.msra.mxu0 %v1307
    %1314 = vmatprep.subr.bf16.mxu0 0
    %1315 = vmatpush1.bf16.msra.mxu0 0
    %1316 = vmatprep.subr.bf16.mxu0 0
    %1317 = vmatpush1.bf16.msra.mxu0 0
    %1318 = vmatprep.subr.bf16.mxu0 0
    %1319 = vmatpush1.bf16.msra.mxu0 0
    %1320 = vmatprep.subr.bf16.mxu0 0
    %1321 = vmatpush1.bf16.msra.mxu0 0
    %1322 = vmatprep.subr.bf16.mxu0 0
    %1323 = vmatpush1.bf16.msra.mxu0 0
    %1324 = vmatprep.subr.bf16.mxu0 0
    %1325 = vmatpush1.bf16.msra.mxu0 0
    %1326 = vmatprep.subr.bf16.mxu0 0
    %1327 = vmatpush1.bf16.msra.mxu0 0
    %1328 = vmatprep.subr.bf16.mxu0 0
    %1329 = vmatpush1.bf16.msra.mxu0 0
    %1330 = vmatprep.subr.bf16.mxu0 0
    %1331 = vmatpush1.bf16.msra.mxu0 0
    %1332 = vmatprep.subr.bf16.mxu0 0
    %1333 = vmatpush1.bf16.msra.mxu0 0
    %1334 = vmatprep.subr.bf16.mxu0 0
    %1335 = vmatpush1.bf16.msra.mxu0 0
    %1336 = vmatprep.subr.bf16.mxu0 0
    %1337 = vmatpush1.bf16.msra.mxu0 0
    %1338 = vmatprep.subr.bf16.mxu0 0
    %1339 = vmatpush1.bf16.msra.mxu0 0
    %1340 = vmatprep.subr.bf16.mxu0 0
    %1341 = vmatpush1.bf16.msra.mxu0 0
    %1342 = vmatprep.subr.bf16.mxu0 0
    %1343 = vmatpush1.bf16.msra.mxu0 0
    %1344 = vmatprep.mubr.bf16.mxu0 0
    %1345 = vmatmul.mubr.bf16.gmra.mrb[0].mxu0 %v1310
    %v1346 = vpop.f32.mrb[0].mxu0
    %v1347 = vadd.f32 0.0, %v1346
    %v1348 = vpop.f32.mrb[0].mxu0
    %v1349 = vpop.f32.mrb[0].mxu0
    %v1350 = vadd.f32 0.0, %v1349
    %v1351 = vpop.f32.mrb[0].mxu0
    %1352 = vdwg.mxu0
    %v1353 = vrcp.pop %v1301
    %v1354 = vrcp.pop %v1304
    %v1355 = vmul.f32 %v1347, %v1353
    %v1356 = vmul.f32 %v1350, %v1354
    %1357 = vrot.lane.b32.xlu0 %v1115, 112
    %v1358 = vpop.permute.xlu0 %1357
    %1359 = vrot.lane.b32.xlu0 %v1115, 80
    %v1360 = vpop.permute.xlu0 %1359
    %v1362 = vsel %vm163, %v1358, 0
    %v1365 = vsel %vm163, %v1360, 0
    %1367 = vmatprep.subr.bf16.mxu0 0
    %1368 = vmatpush1.bf16.xpose.msra.mxu0 %v1365
    %1369 = vmatprep.subr.bf16.mxu0 0
    %1370 = vmatpush1.bf16.xpose.msra.mxu0 0
    %1371 = vmatprep.subr.bf16.mxu0 0
    %1372 = vmatpush1.bf16.xpose.msra.mxu0 0
    %1373 = vmatprep.subr.bf16.mxu0 0
    %1374 = vmatpush1.bf16.xpose.msra.mxu0 0
    %1375 = vmatprep.subr.bf16.mxu0 0
    %1376 = vmatpush1.bf16.xpose.msra.mxu0 0
    %1377 = vmatprep.subr.bf16.mxu0 0
    %1378 = vmatpush1.bf16.xpose.msra.mxu0 0
    %1379 = vmatprep.subr.bf16.mxu0 0
    %1380 = vmatpush1.bf16.xpose.msra.mxu0 0
    %1381 = vmatprep.subr.bf16.mxu0 0
    %1382 = vmatpush1.bf16.xpose.msra.mxu0 0
    %1383 = vmatprep.subr.bf16.mxu0 0
    %1384 = vmatpush1.bf16.xpose.msra.mxu0 0
    %1385 = vmatprep.subr.bf16.mxu0 0
    %1386 = vmatpush1.bf16.xpose.msra.mxu0 0
    %1387 = vmatprep.subr.bf16.mxu0 0
    %1388 = vmatpush1.bf16.xpose.msra.mxu0 0
    %1389 = vmatprep.subr.bf16.mxu0 0
    %1390 = vmatpush1.bf16.xpose.msra.mxu0 0
    %1391 = vmatprep.subr.bf16.mxu0 0
    %1392 = vmatpush1.bf16.xpose.msra.mxu0 0
    %1393 = vmatprep.subr.bf16.mxu0 0
    %1394 = vmatpush1.bf16.xpose.msra.mxu0 0
    %1395 = vmatprep.subr.bf16.mxu0 0
    %1396 = vmatpush1.bf16.xpose.msra.mxu0 0
    %1397 = vmatprep.subr.bf16.mxu0 0
    %1398 = vmatpush1.bf16.xpose.msra.mxu0 0
    %1399 = vmatprep.mubr.bf16.mxu0 0
    %1400 = vmatmul.mubr.bf16.gmra.mrb[0].mxu0 %v1362
    %v1401 = vpop.f32.mrb[0].mxu0
    %v1402 = vadd.f32 %v36, %v1401
    %v1403 = vpop.f32.mrb[0].mxu0
    %v1404 = vpop.f32.mrb[0].mxu0
    %v1405 = vadd.f32 %v37, %v1404
    %v1406 = vpop.f32.mrb[0].mxu0
    %1407 = vdwg.mxu0
    %v1408 = vsel %vm211, %v1402, -inf
    %1409 = vmax.xlane.f32.xlu0 %v1408
    %v1410 = vpop.xlane.xlu0 %1409
    %v1411 = vsel %vm211, %v1405, -inf
    %1412 = vmax.xlane.f32.xlu0 %v1411
    %v1413 = vpop.xlane.xlu0 %1412
    %v1414 = vsub.f32 %v1402, %v1410
    %v1415 = vsub.f32 %v1405, %v1413
    %v1416 = vmul.f32 %v1414, 1.442695
    %v1417 = vpow.pop %v1416
    %v1418 = vmul.f32 %v1415, 1.442695
    %v1419 = vpow.pop %v1418
    %v1420 = vsel %vm211, %v1417, 0.0
    %1421 = vadd.xlane.f32.xlu0 %v1420
    %v1422 = vpop.xlane.xlu0 %1421
    %v1423 = vsel %vm211, %v1419, 0.0
    %1424 = vadd.xlane.f32.xlu0 %v1423
    %v1425 = vpop.xlane.xlu0 %1424
    %v1426 = vpack.c.bf16 %v1419, %v1417
    %1427 = vrot.lane.b32.xlu0 %v1115, 48
    %v1428 = vpop.permute.xlu0 %1427
    %v1431 = vsel %vm211, %v1426, 0
    %1433 = vmatprep.subr.bf16.mxu0 0
    %1434 = vmatpush1.bf16.msra.mxu0 %v1428
    %1435 = vmatprep.subr.bf16.mxu0 0
    %1436 = vmatpush1.bf16.msra.mxu0 0
    %1437 = vmatprep.subr.bf16.mxu0 0
    %1438 = vmatpush1.bf16.msra.mxu0 0
    %1439 = vmatprep.subr.bf16.mxu0 0
    %1440 = vmatpush1.bf16.msra.mxu0 0
    %1441 = vmatprep.subr.bf16.mxu0 0
    %1442 = vmatpush1.bf16.msra.mxu0 0
    %1443 = vmatprep.subr.bf16.mxu0 0
    %1444 = vmatpush1.bf16.msra.mxu0 0
    %1445 = vmatprep.subr.bf16.mxu0 0
    %1446 = vmatpush1.bf16.msra.mxu0 0
    %1447 = vmatprep.subr.bf16.mxu0 0
    %1448 = vmatpush1.bf16.msra.mxu0 0
    %1449 = vmatprep.subr.bf16.mxu0 0
    %1450 = vmatpush1.bf16.msra.mxu0 0
    %1451 = vmatprep.subr.bf16.mxu0 0
    %1452 = vmatpush1.bf16.msra.mxu0 0
    %1453 = vmatprep.subr.bf16.mxu0 0
    %1454 = vmatpush1.bf16.msra.mxu0 0
    %1455 = vmatprep.subr.bf16.mxu0 0
    %1456 = vmatpush1.bf16.msra.mxu0 0
    %1457 = vmatprep.subr.bf16.mxu0 0
    %1458 = vmatpush1.bf16.msra.mxu0 0
    %1459 = vmatprep.subr.bf16.mxu0 0
    %1460 = vmatpush1.bf16.msra.mxu0 0
    %1461 = vmatprep.subr.bf16.mxu0 0
    %1462 = vmatpush1.bf16.msra.mxu0 0
    %1463 = vmatprep.subr.bf16.mxu0 0
    %1464 = vmatpush1.bf16.msra.mxu0 0
    %1465 = vmatprep.mubr.bf16.mxu0 0
    %1466 = vmatmul.mubr.bf16.gmra.mrb[0].mxu0 %v1431
    %v1467 = vpop.f32.mrb[0].mxu0
    %v1468 = vadd.f32 0.0, %v1467
    %v1469 = vpop.f32.mrb[0].mxu0
    %v1470 = vpop.f32.mrb[0].mxu0
    %v1471 = vadd.f32 0.0, %v1470
    %v1472 = vpop.f32.mrb[0].mxu0
    %1473 = vdwg.mxu0
    %v1474 = vrcp.pop %v1422
    %v1475 = vrcp.pop %v1425
    %v1476 = vmul.f32 %v1468, %v1474
    %v1477 = vmul.f32 %v1471, %v1475
    %1478 = vrot.lane.b32.xlu0 %v1115, 104
    %v1479 = vpop.permute.xlu0 %1478
    %1480 = vrot.lane.b32.xlu0 %v1115, 72
    %v1481 = vpop.permute.xlu0 %1480
    %v1483 = vsel %vm163, %v1479, 0
    %v1486 = vsel %vm163, %v1481, 0
    %1488 = vmatprep.subr.bf16.mxu0 0
    %1489 = vmatpush1.bf16.xpose.msra.mxu0 %v1486
    %1490 = vmatprep.subr.bf16.mxu0 0
    %1491 = vmatpush1.bf16.xpose.msra.mxu0 0
    %1492 = vmatprep.subr.bf16.mxu0 0
    %1493 = vmatpush1.bf16.xpose.msra.mxu0 0
    %1494 = vmatprep.subr.bf16.mxu0 0
    %1495 = vmatpush1.bf16.xpose.msra.mxu0 0
    %1496 = vmatprep.subr.bf16.mxu0 0
    %1497 = vmatpush1.bf16.xpose.msra.mxu0 0
    %1498 = vmatprep.subr.bf16.mxu0 0
    %1499 = vmatpush1.bf16.xpose.msra.mxu0 0
    %1500 = vmatprep.subr.bf16.mxu0 0
    %1501 = vmatpush1.bf16.xpose.msra.mxu0 0
    %1502 = vmatprep.subr.bf16.mxu0 0
    %1503 = vmatpush1.bf16.xpose.msra.mxu0 0
    %1504 = vmatprep.subr.bf16.mxu0 0
    %1505 = vmatpush1.bf16.xpose.msra.mxu0 0
    %1506 = vmatprep.subr.bf16.mxu0 0
    %1507 = vmatpush1.bf16.xpose.msra.mxu0 0
    %1508 = vmatprep.subr.bf16.mxu0 0
    %1509 = vmatpush1.bf16.xpose.msra.mxu0 0
    %1510 = vmatprep.subr.bf16.mxu0 0
    %1511 = vmatpush1.bf16.xpose.msra.mxu0 0
    %1512 = vmatprep.subr.bf16.mxu0 0
    %1513 = vmatpush1.bf16.xpose.msra.mxu0 0
    %1514 = vmatprep.subr.bf16.mxu0 0
    %1515 = vmatpush1.bf16.xpose.msra.mxu0 0
    %1516 = vmatprep.subr.bf16.mxu0 0
    %1517 = vmatpush1.bf16.xpose.msra.mxu0 0
    %1518 = vmatprep.subr.bf16.mxu0 0
    %1519 = vmatpush1.bf16.xpose.msra.mxu0 0
    %1520 = vmatprep.mubr.bf16.mxu0 0
    %1521 = vmatmul.mubr.bf16.gmra.mrb[0].mxu0 %v1483
    %v1522 = vpop.f32.mrb[0].mxu0
    %v1523 = vadd.f32 %v36, %v1522
    %v1524 = vpop.f32.mrb[0].mxu0
    %v1525 = vpop.f32.mrb[0].mxu0
    %v1526 = vadd.f32 %v37, %v1525
    %v1527 = vpop.f32.mrb[0].mxu0
    %1528 = vdwg.mxu0
    %v1529 = vsel %vm211, %v1523, -inf
    %1530 = vmax.xlane.f32.xlu0 %v1529
    %v1531 = vpop.xlane.xlu0 %1530
    %v1532 = vsel %vm211, %v1526, -inf
    %1533 = vmax.xlane.f32.xlu0 %v1532
    %v1534 = vpop.xlane.xlu0 %1533
    %v1535 = vsub.f32 %v1523, %v1531
    %v1536 = vsub.f32 %v1526, %v1534
    %v1537 = vmul.f32 %v1535, 1.442695
    %v1538 = vpow.pop %v1537
    %v1539 = vmul.f32 %v1536, 1.442695
    %v1540 = vpow.pop %v1539
    %v1541 = vsel %vm211, %v1538, 0.0
    %1542 = vadd.xlane.f32.xlu0 %v1541
    %v1543 = vpop.xlane.xlu0 %1542
    %v1544 = vsel %vm211, %v1540, 0.0
    %1545 = vadd.xlane.f32.xlu0 %v1544
    %v1546 = vpop.xlane.xlu0 %1545
    %v1547 = vpack.c.bf16 %v1540, %v1538
    %1548 = vrot.lane.b32.xlu0 %v1115, 40
    %v1549 = vpop.permute.xlu0 %1548
    %v1552 = vsel %vm211, %v1547, 0
    %1554 = vmatprep.subr.bf16.mxu0 0
    %1555 = vmatpush1.bf16.msra.mxu0 %v1549
    %1556 = vmatprep.subr.bf16.mxu0 0
    %1557 = vmatpush1.bf16.msra.mxu0 0
    %1558 = vmatprep.subr.bf16.mxu0 0
    %1559 = vmatpush1.bf16.msra.mxu0 0
    %1560 = vmatprep.subr.bf16.mxu0 0
    %1561 = vmatpush1.bf16.msra.mxu0 0
    %1562 = vmatprep.subr.bf16.mxu0 0
    %1563 = vmatpush1.bf16.msra.mxu0 0
    %1564 = vmatprep.subr.bf16.mxu0 0
    %1565 = vmatpush1.bf16.msra.mxu0 0
    %1566 = vmatprep.subr.bf16.mxu0 0
    %1567 = vmatpush1.bf16.msra.mxu0 0
    %1568 = vmatprep.subr.bf16.mxu0 0
    %1569 = vmatpush1.bf16.msra.mxu0 0
    %1570 = vmatprep.subr.bf16.mxu0 0
    %1571 = vmatpush1.bf16.msra.mxu0 0
    %1572 = vmatprep.subr.bf16.mxu0 0
    %1573 = vmatpush1.bf16.msra.mxu0 0
    %1574 = vmatprep.subr.bf16.mxu0 0
    %1575 = vmatpush1.bf16.msra.mxu0 0
    %1576 = vmatprep.subr.bf16.mxu0 0
    %1577 = vmatpush1.bf16.msra.mxu0 0
    %1578 = vmatprep.subr.bf16.mxu0 0
    %1579 = vmatpush1.bf16.msra.mxu0 0
    %1580 = vmatprep.subr.bf16.mxu0 0
    %1581 = vmatpush1.bf16.msra.mxu0 0
    %1582 = vmatprep.subr.bf16.mxu0 0
    %1583 = vmatpush1.bf16.msra.mxu0 0
    %1584 = vmatprep.subr.bf16.mxu0 0
    %1585 = vmatpush1.bf16.msra.mxu0 0
    %1586 = vmatprep.mubr.bf16.mxu0 0
    %1587 = vmatmul.mubr.bf16.gmra.mrb[0].mxu0 %v1552
    %v1588 = vpop.f32.mrb[0].mxu0
    %v1589 = vadd.f32 0.0, %v1588
    %v1590 = vpop.f32.mrb[0].mxu0
    %v1591 = vpop.f32.mrb[0].mxu0
    %v1592 = vadd.f32 0.0, %v1591
    %v1593 = vpop.f32.mrb[0].mxu0
    %1594 = vdwg.mxu0
    %v1595 = vrcp.pop %v1543
    %v1596 = vrcp.pop %v1546
    %v1597 = vmul.f32 %v1589, %v1595
    %v1598 = vmul.f32 %v1592, %v1596
    %1601 = vrot.lane.b32.xlu0 %v1355, 8
    %v1602 = vpop.permute.xlu0 %1601
    %1603 = vrot.lane.b32.xlu0 %v1356, 8
    %v1604 = vpop.permute.xlu0 %1603
    %1609 = vrot.lane.b32.xlu0 %v1476, 16
    %v1610 = vpop.permute.xlu0 %1609
    %1611 = vrot.lane.b32.xlu0 %v1477, 16
    %v1612 = vpop.permute.xlu0 %1611
    %1617 = vrot.lane.b32.xlu0 %v1597, 24
    %v1618 = vpop.permute.xlu0 %1617
    %1619 = vrot.lane.b32.xlu0 %v1598, 24
    %v1620 = vpop.permute.xlu0 %1619
    %v1623 = vsel %vm163, %v1234, %v1602
    %v1624 = vsel %vm163, %v1235, %v1604
    %v1625 = vsel %vm211, %v1623, %v1610
    %v1626 = vsel %vm211, %v1624, %v1612
    %v1627 = vsel %vm673, %v1625, %v1618
    %v1628 = vsel %vm673, %v1626, %v1620
    %s1629 = scalar_lea.vmem %s5, 16
    %v1630 = vld [vmem:[%s1629] sm:$0xf]
    %v1631 = vld [vmem:[%s1629 + $0x4] sm:$0xf]
    %v1632 = vld [vmem:[%s1629 + $0x8] sm:$0xf]
    %v1633 = vld [vmem:[%s1629 + $0xc] sm:$0xf]
    %v1634 = vpack.c.bf16 %v1628, %v1627
    %v1639 = vunpack.c.l.b16 %v1630
    %v1640 = vunpack.c.l.b16 %v1631
    %v1641 = vunpack.c.l.b16 %v1632
    %v1642 = vunpack.c.l.b16 %v1633
    %v1643 = vpack.c.b16 %v1640, %v1639
    %v1644 = vpack.c.b16 %v1642, %v1641
    %v1648 = vsel %vm44, %v1634, 0
    %1650 = vmatprep.subr.bf16.mxu0 0
    %1651 = vmatpush1.bf16.msra.mxu0 %v1643
    %1652 = vmatprep.subr.bf16.mxu0 0
    %1653 = vmatpush1.bf16.msra.mxu0 %v1644
    %1654 = vmatprep.subr.bf16.mxu0 0
    %1655 = vmatpush1.bf16.msra.mxu0 0
    %1656 = vmatprep.subr.bf16.mxu0 0
    %1657 = vmatpush1.bf16.msra.mxu0 0
    %1658 = vmatprep.subr.bf16.mxu0 0
    %1659 = vmatpush1.bf16.msra.mxu0 0
    %1660 = vmatprep.subr.bf16.mxu0 0
    %1661 = vmatpush1.bf16.msra.mxu0 0
    %1662 = vmatprep.subr.bf16.mxu0 0
    %1663 = vmatpush1.bf16.msra.mxu0 0
    %1664 = vmatprep.subr.bf16.mxu0 0
    %1665 = vmatpush1.bf16.msra.mxu0 0
    %1666 = vmatprep.subr.bf16.mxu0 0
    %1667 = vmatpush1.bf16.msra.mxu0 0
    %1668 = vmatprep.subr.bf16.mxu0 0
    %1669 = vmatpush1.bf16.msra.mxu0 0
    %1670 = vmatprep.subr.bf16.mxu0 0
    %1671 = vmatpush1.bf16.msra.mxu0 0
    %1672 = vmatprep.subr.bf16.mxu0 0
    %1673 = vmatpush1.bf16.msra.mxu0 0
    %1674 = vmatprep.subr.bf16.mxu0 0
    %1675 = vmatpush1.bf16.msra.mxu0 0
    %1676 = vmatprep.subr.bf16.mxu0 0
    %1677 = vmatpush1.bf16.msra.mxu0 0
    %1678 = vmatprep.subr.bf16.mxu0 0
    %1679 = vmatpush1.bf16.msra.mxu0 0
    %1680 = vmatprep.subr.bf16.mxu0 0
    %1681 = vmatpush1.bf16.msra.mxu0 0
    %1682 = vmatprep.mubr.bf16.mxu0 0
    %1683 = vmatmul.mubr.bf16.gmra.mrb[0].mxu0 %v1648
    %v1684 = vpop.f32.mrb[0].mxu0
    %v1685 = vadd.f32 0.0, %v1684
    %v1686 = vpop.f32.mrb[0].mxu0
    %v1687 = vpop.f32.mrb[0].mxu0
    %v1688 = vadd.f32 0.0, %v1687
    %v1689 = vpop.f32.mrb[0].mxu0
    %1690 = vdwg.mxu0
    %v1691 = vadd.f32 %v993, %v1685
    %v1692 = vadd.f32 %v994, %v1688
    %v1693 = vlaneseq
    %v1694 = vshrl.u32 %v1693, 7
    %v1695 = vsub.s32 0, %v1694
    %v1696 = vrot.slane %v997, %v1695
    %v1697 = vadd.f32 %v1691, %v1696
    %v1698 = vadd.f32 %v1692, %v1696
    %v1699 = vsel %vm44, %v1697, 0.0
    %1700 = vadd.xlane.f32.xlu0 %v1699
    %v1701 = vpop.xlane.xlu0 %1700
    %v1702 = vsel %vm44, %v1698, 0.0
    %1703 = vadd.xlane.f32.xlu0 %v1702
    %v1704 = vpop.xlane.xlu0 %1703
    %v1705 = vmul.f32 %v1701, %v51
    %v1706 = vmul.f32 %v1704, %v51
    %v1707 = vsub.f32 %v1697, %v1705
    %v1708 = vsub.f32 %v1698, %v1706
    %v1709 = vmul.f32 %v1707, %v1707
    %v1710 = vmul.f32 %v1708, %v1708
    %v1711 = vsel %vm44, %v1709, 0.0
    %1712 = vadd.xlane.f32.xlu0 %v1711
    %v1713 = vpop.xlane.xlu0 %1712
    %v1714 = vsel %vm44, %v1710, 0.0
    %1715 = vadd.xlane.f32.xlu0 %v1714
    %v1716 = vpop.xlane.xlu0 %1715
    %v1717 = vmul.f32 %v1713, %v51
    %v1718 = vmul.f32 %v1716, %v51
    %v1719 = vrsqrt.pop %v1717
    %v1720 = vmul.f32 %v1717, %v1719
    %vm1721 = vcmp.eq.f32.partialorder %v1717, inf
    %v1722 = vsel %vm1721, %v1717, %v1720
    %vm1723 = vcmp.eq.f32.partialorder %v1717, 0.0
    %v1724 = vand.u32 %v1717, 2147483648
    %v1725 = vsel %vm1723, %v1724, %v1722
    %v1726 = vrsqrt.pop %v1718
    %v1727 = vmul.f32 %v1718, %v1726
    %vm1728 = vcmp.eq.f32.partialorder %v1718, inf
    %v1729 = vsel %vm1728, %v1718, %v1727
    %vm1730 = vcmp.eq.f32.partialorder %v1718, 0.0
    %v1731 = vand.u32 %v1718, 2147483648
    %v1732 = vsel %vm1730, %v1731, %v1729
    %v1733 = vadd.f32 %v1725, 1e-05
    %v1734 = vadd.f32 %v1732, 1e-05
    %v1735 = vrcp.pop %v1733
    %v1736 = vrcp.pop %v1734
    %v1737 = vmul.f32 %v1707, %v1735
    %v1738 = vmul.f32 %v1708, %v1736
    %v1739 = vlaneseq
    %v1740 = vshrl.u32 %v1739, 7
    %v1741 = vsub.s32 0, %v1740
    %v1742 = vrot.slane %v998, %v1741
    %v1743 = vmul.f32 %v1742, %v1737
    %v1744 = vmul.f32 %v1742, %v1738
    %v1745 = vlaneseq
    %v1746 = vshrl.u32 %v1745, 7
    %v1747 = vsub.s32 0, %v1746
    %v1748 = vrot.slane %v999, %v1747
    %v1749 = vadd.f32 %v1743, %v1748
    %v1750 = vadd.f32 %v1744, %v1748
    %s1751 = scalar_lea.vmem %s6, 16
    %v1752 = vld [vmem:[%s1751] sm:$0xf]
    %v1753 = vld [vmem:[%s1751 + $0x4] sm:$0xf]
    %v1754 = vld [vmem:[%s1751 + $0x8] sm:$0xf]
    %v1755 = vld [vmem:[%s1751 + $0xc] sm:$0xf]
    %v1756 = vpack.c.bf16 %v1750, %v1749
    %v1757 = vld [vmem:[%s3 + $0x1] sm:$0x1]
    %v1758 = vlaneseq
    %v1759 = vshrl.u32 %v1758, 7
    %v1760 = vsub.s32 0, %v1759
    %v1761 = vrot.slane %v1757, %v1760
    %v1766 = vunpack.c.l.b16 %v1752
    %v1767 = vunpack.c.l.b16 %v1753
    %v1768 = vunpack.c.l.b16 %v1754
    %v1769 = vunpack.c.l.b16 %v1755
    %v1770 = vpack.c.b16 %v1767, %v1766
    %v1771 = vpack.c.b16 %v1769, %v1768
    %v1775 = vsel %vm44, %v1756, 0
    %1777 = vmatprep.subr.bf16.mxu0 0
    %1778 = vmatpush1.bf16.msra.mxu0 %v1770
    %1779 = vmatprep.subr.bf16.mxu0 0
    %1780 = vmatpush1.bf16.msra.mxu0 %v1771
    %1781 = vmatprep.subr.bf16.mxu0 0
    %1782 = vmatpush1.bf16.msra.mxu0 0
    %1783 = vmatprep.subr.bf16.mxu0 0
    %1784 = vmatpush1.bf16.msra.mxu0 0
    %1785 = vmatprep.subr.bf16.mxu0 0
    %1786 = vmatpush1.bf16.msra.mxu0 0
    %1787 = vmatprep.subr.bf16.mxu0 0
    %1788 = vmatpush1.bf16.msra.mxu0 0
    %1789 = vmatprep.subr.bf16.mxu0 0
    %1790 = vmatpush1.bf16.msra.mxu0 0
    %1791 = vmatprep.subr.bf16.mxu0 0
    %1792 = vmatpush1.bf16.msra.mxu0 0
    %1793 = vmatprep.subr.bf16.mxu0 0
    %1794 = vmatpush1.bf16.msra.mxu0 0
    %1795 = vmatprep.subr.bf16.mxu0 0
    %1796 = vmatpush1.bf16.msra.mxu0 0
    %1797 = vmatprep.subr.bf16.mxu0 0
    %1798 = vmatpush1.bf16.msra.mxu0 0
    %1799 = vmatprep.subr.bf16.mxu0 0
    %1800 = vmatpush1.bf16.msra.mxu0 0
    %1801 = vmatprep.subr.bf16.mxu0 0
    %1802 = vmatpush1.bf16.msra.mxu0 0
    %1803 = vmatprep.subr.bf16.mxu0 0
    %1804 = vmatpush1.bf16.msra.mxu0 0
    %1805 = vmatprep.subr.bf16.mxu0 0
    %1806 = vmatpush1.bf16.msra.mxu0 0
    %1807 = vmatprep.subr.bf16.mxu0 0
    %1808 = vmatpush1.bf16.msra.mxu0 0
    %1809 = vmatprep.mubr.bf16.mxu0 0
    %1810 = vmatmul.mubr.bf16.gmra.mrb[0].mxu0 %v1775
    %v1811 = vpop.f32.mrb[0].mxu0
    %v1812 = vadd.f32 %v1761, %v1811
    %v1813 = vpop.f32.mrb[0].mxu0
    %v1814 = vpop.f32.mrb[0].mxu0
    %v1815 = vadd.f32 %v1761, %v1814
    %v1816 = vpop.f32.mrb[0].mxu0
    %1817 = vdwg.mxu0
    %v1818 = vmul.f32 %v1812, 0.5
    %v1819 = vmul.f32 %v1815, 0.5
    %v1820 = vmul.f32 %v1812, %v1812
    %v1821 = vmul.f32 %v1815, %v1815
    %v1822 = vmul.f32 %v1812, %v1820
    %v1823 = vmul.f32 %v1815, %v1821
    %v1824 = vmul.f32 %v1822, 0.044715
    %v1825 = vmul.f32 %v1823, 0.044715
    %v1826 = vadd.f32 %v1812, %v1824
    %v1827 = vadd.f32 %v1815, %v1825
    %v1828 = vmul.f32 %v1826, 0.7978846
    %v1829 = vmul.f32 %v1827, 0.7978846
    %v1830 = vtanh.pop %v1828
    %v1831 = vtanh.pop %v1829
    %v1832 = vadd.f32 %v1830, 1.0
    %v1833 = vadd.f32 %v1831, 1.0
    %v1834 = vmul.f32 %v1818, %v1832
    %v1835 = vmul.f32 %v1819, %v1833
    %s1836 = scalar_lea.vmem %s7, 64
    %v1837 = vld [vmem:[%s1836] sm:$0xf]
    %v1838 = vld [vmem:[%s1836 + $0x4] sm:$0xf]
    %v1839 = vld [vmem:[%s1836 + $0x8] sm:$0xf]
    %v1840 = vld [vmem:[%s1836 + $0xc] sm:$0xf]
    %v1841 = vld [vmem:[%s1836 + $0x10] sm:$0xf]
    %v1842 = vld [vmem:[%s1836 + $0x14] sm:$0xf]
    %v1843 = vld [vmem:[%s1836 + $0x18] sm:$0xf]
    %v1844 = vld [vmem:[%s1836 + $0x1c] sm:$0xf]
    %v1845 = vld [vmem:[%s1836 + $0x20] sm:$0xf]
    %v1846 = vld [vmem:[%s1836 + $0x24] sm:$0xf]
    %v1847 = vld [vmem:[%s1836 + $0x28] sm:$0xf]
    %v1848 = vld [vmem:[%s1836 + $0x2c] sm:$0xf]
    %v1849 = vld [vmem:[%s1836 + $0x30] sm:$0xf]
    %v1850 = vld [vmem:[%s1836 + $0x34] sm:$0xf]
    %v1851 = vld [vmem:[%s1836 + $0x38] sm:$0xf]
    %v1852 = vld [vmem:[%s1836 + $0x3c] sm:$0xf]
    %v1853 = vpack.c.bf16 %v1835, %v1834
    %v1870 = vunpack.c.l.b16 %v1837
    %v1871 = vunpack.c.l.b16 %v1838
    %v1872 = vunpack.c.l.b16 %v1839
    %v1873 = vunpack.c.l.b16 %v1840
    %v1874 = vunpack.c.l.b16 %v1841
    %v1875 = vunpack.c.l.b16 %v1842
    %v1876 = vunpack.c.l.b16 %v1843
    %v1877 = vunpack.c.l.b16 %v1844
    %v1878 = vunpack.c.l.b16 %v1845
    %v1879 = vunpack.c.l.b16 %v1846
    %v1880 = vunpack.c.l.b16 %v1847
    %v1881 = vunpack.c.l.b16 %v1848
    %v1882 = vunpack.c.l.b16 %v1849
    %v1883 = vunpack.c.l.b16 %v1850
    %v1884 = vunpack.c.l.b16 %v1851
    %v1885 = vunpack.c.l.b16 %v1852
    %v1886 = vpack.c.b16 %v1871, %v1870
    %v1887 = vpack.c.b16 %v1873, %v1872
    %v1888 = vpack.c.b16 %v1875, %v1874
    %v1889 = vpack.c.b16 %v1877, %v1876
    %v1890 = vpack.c.b16 %v1879, %v1878
    %v1891 = vpack.c.b16 %v1881, %v1880
    %v1892 = vpack.c.b16 %v1883, %v1882
    %v1893 = vpack.c.b16 %v1885, %v1884
    %1902 = vmatprep.subr.bf16.mxu0 0
    %1903 = vmatpush1.bf16.msra.mxu0 %v1886
    %1904 = vmatprep.subr.bf16.mxu0 0
    %1905 = vmatpush1.bf16.msra.mxu0 %v1887
    %1906 = vmatprep.subr.bf16.mxu0 0
    %1907 = vmatpush1.bf16.msra.mxu0 %v1888
    %1908 = vmatprep.subr.bf16.mxu0 0
    %1909 = vmatpush1.bf16.msra.mxu0 %v1889
    %1910 = vmatprep.subr.bf16.mxu0 0
    %1911 = vmatpush1.bf16.msra.mxu0 %v1890
    %1912 = vmatprep.subr.bf16.mxu0 0
    %1913 = vmatpush1.bf16.msra.mxu0 %v1891
    %1914 = vmatprep.subr.bf16.mxu0 0
    %1915 = vmatpush1.bf16.msra.mxu0 %v1892
    %1916 = vmatprep.subr.bf16.mxu0 0
    %1917 = vmatpush1.bf16.msra.mxu0 %v1893
    %1918 = vmatprep.subr.bf16.mxu0 0
    %1919 = vmatpush1.bf16.msra.mxu0 0
    %1920 = vmatprep.subr.bf16.mxu0 0
    %1921 = vmatpush1.bf16.msra.mxu0 0
    %1922 = vmatprep.subr.bf16.mxu0 0
    %1923 = vmatpush1.bf16.msra.mxu0 0
    %1924 = vmatprep.subr.bf16.mxu0 0
    %1925 = vmatpush1.bf16.msra.mxu0 0
    %1926 = vmatprep.subr.bf16.mxu0 0
    %1927 = vmatpush1.bf16.msra.mxu0 0
    %1928 = vmatprep.subr.bf16.mxu0 0
    %1929 = vmatpush1.bf16.msra.mxu0 0
    %1930 = vmatprep.subr.bf16.mxu0 0
    %1931 = vmatpush1.bf16.msra.mxu0 0
    %1932 = vmatprep.subr.bf16.mxu0 0
    %1933 = vmatpush1.bf16.msra.mxu0 0
    %1934 = vmatprep.mubr.bf16.mxu0 0
    %1935 = vmatmul.mubr.bf16.gmra.mrb[0].mxu0 %v1853
    %v1936 = vpop.f32.mrb[0].mxu0
    %v1937 = vadd.f32 0.0, %v1936
    %v1938 = vpop.f32.mrb[0].mxu0
    %v1939 = vpop.f32.mrb[0].mxu0
    %v1940 = vadd.f32 0.0, %v1939
    %v1941 = vpop.f32.mrb[0].mxu0
    %1942 = vdwg.mxu0
    %v1943 = vadd.f32 %v1697, %v1937
    %v1944 = vadd.f32 %v1698, %v1940
    %v1945 = vlaneseq
    %v1946 = vshrl.u32 %v1945, 7
    %v1947 = vsub.s32 0, %v1946
    %v1948 = vrot.slane %v1000, %v1947
    %v1949 = vadd.f32 %v1943, %v1948
    %v1950 = vadd.f32 %v1944, %v1948
    %v1951 = vld [vmem:[%s2 + $0xc] sm:$0x1]
    %v1952 = vld [vmem:[%s2 + $0xd] sm:$0x1]
    %v1953 = vsel %vm44, %v1949, 0.0
    %1954 = vadd.xlane.f32.xlu0 %v1953
    %v1955 = vpop.xlane.xlu0 %1954
    %v1956 = vsel %vm44, %v1950, 0.0
    %1957 = vadd.xlane.f32.xlu0 %v1956
    %v1958 = vpop.xlane.xlu0 %1957
    %v1959 = vmul.f32 %v1955, %v51
    %v1960 = vmul.f32 %v1958, %v51
    %v1961 = vsub.f32 %v1949, %v1959
    %v1962 = vsub.f32 %v1950, %v1960
    %v1963 = vmul.f32 %v1961, %v1961
    %v1964 = vmul.f32 %v1962, %v1962
    %v1965 = vsel %vm44, %v1963, 0.0
    %1966 = vadd.xlane.f32.xlu0 %v1965
    %v1967 = vpop.xlane.xlu0 %1966
    %v1968 = vsel %vm44, %v1964, 0.0
    %1969 = vadd.xlane.f32.xlu0 %v1968
    %v1970 = vpop.xlane.xlu0 %1969
    %v1971 = vmul.f32 %v1967, %v51
    %v1972 = vmul.f32 %v1970, %v51
    %v1973 = vrsqrt.pop %v1971
    %v1974 = vmul.f32 %v1971, %v1973
    %vm1975 = vcmp.eq.f32.partialorder %v1971, inf
    %v1976 = vsel %vm1975, %v1971, %v1974
    %vm1977 = vcmp.eq.f32.partialorder %v1971, 0.0
    %v1978 = vand.u32 %v1971, 2147483648
    %v1979 = vsel %vm1977, %v1978, %v1976
    %v1980 = vrsqrt.pop %v1972
    %v1981 = vmul.f32 %v1972, %v1980
    %vm1982 = vcmp.eq.f32.partialorder %v1972, inf
    %v1983 = vsel %vm1982, %v1972, %v1981
    %vm1984 = vcmp.eq.f32.partialorder %v1972, 0.0
    %v1985 = vand.u32 %v1972, 2147483648
    %v1986 = vsel %vm1984, %v1985, %v1983
    %v1987 = vadd.f32 %v1979, 1e-05
    %v1988 = vadd.f32 %v1986, 1e-05
    %v1989 = vrcp.pop %v1987
    %v1990 = vrcp.pop %v1988
    %v1991 = vmul.f32 %v1961, %v1989
    %v1992 = vmul.f32 %v1962, %v1990
    %v1993 = vlaneseq
    %v1994 = vshrl.u32 %v1993, 7
    %v1995 = vsub.s32 0, %v1994
    %v1996 = vrot.slane %v1951, %v1995
    %v1997 = vmul.f32 %v1996, %v1991
    %v1998 = vmul.f32 %v1996, %v1992
    %v1999 = vlaneseq
    %v2000 = vshrl.u32 %v1999, 7
    %v2001 = vsub.s32 0, %v2000
    %v2002 = vrot.slane %v1952, %v2001
    %v2003 = vadd.f32 %v1997, %v2002
    %v2004 = vadd.f32 %v1998, %v2002
    %v2005 = vld [vmem:[%s8] sm:$0xff]
    %v2006 = vld [vmem:[%s8 + $0x8] sm:$0xff]
    %v2007 = vld [vmem:[%s8 + $0x10] sm:$0xff]
    %v2008 = vld [vmem:[%s8 + $0x18] sm:$0xff]
    %v2009 = vpack.c.bf16 %v2004, %v2003
    %v2014 = vunpack.c.l.b16 %v2005
    %v2015 = vunpack.c.h.b16 %v2005
    %v2016 = vunpack.c.l.b16 %v2006
    %v2017 = vunpack.c.h.b16 %v2006
    %v2018 = vunpack.c.l.b16 %v2007
    %v2019 = vunpack.c.h.b16 %v2007
    %v2020 = vunpack.c.l.b16 %v2008
    %v2021 = vunpack.c.h.b16 %v2008
    %v2022 = vpack.c.b16 %v2016, %v2014
    %v2023 = vpack.c.b16 %v2017, %v2015
    %v2024 = vpack.c.b16 %v2020, %v2018
    %v2025 = vpack.c.b16 %v2021, %v2019
    %v2031 = vsel %vm44, %v2009, 0
    %2033 = vmatprep.subr.bf16.mxu0 %v2023
    %2034 = vmatpush1.bf16.msra.mxu0 %v2022
    %2035 = vmatprep.subr.bf16.mxu0 %v2025
    %2036 = vmatpush1.bf16.msra.mxu0 %v2024
    %2037 = vmatprep.subr.bf16.mxu0 0
    %2038 = vmatpush1.bf16.msra.mxu0 0
    %2039 = vmatprep.subr.bf16.mxu0 0
    %2040 = vmatpush1.bf16.msra.mxu0 0
    %2041 = vmatprep.subr.bf16.mxu0 0
    %2042 = vmatpush1.bf16.msra.mxu0 0
    %2043 = vmatprep.subr.bf16.mxu0 0
    %2044 = vmatpush1.bf16.msra.mxu0 0
    %2045 = vmatprep.subr.bf16.mxu0 0
    %2046 = vmatpush1.bf16.msra.mxu0 0
    %2047 = vmatprep.subr.bf16.mxu0 0
    %2048 = vmatpush1.bf16.msra.mxu0 0
    %2049 = vmatprep.subr.bf16.mxu0 0
    %2050 = vmatpush1.bf16.msra.mxu0 0
    %2051 = vmatprep.subr.bf16.mxu0 0
    %2052 = vmatpush1.bf16.msra.mxu0 0
    %2053 = vmatprep.subr.bf16.mxu0 0
    %2054 = vmatpush1.bf16.msra.mxu0 0
    %2055 = vmatprep.subr.bf16.mxu0 0
    %2056 = vmatpush1.bf16.msra.mxu0 0
    %2057 = vmatprep.subr.bf16.mxu0 0
    %2058 = vmatpush1.bf16.msra.mxu0 0
    %2059 = vmatprep.subr.bf16.mxu0 0
    %2060 = vmatpush1.bf16.msra.mxu0 0
    %2061 = vmatprep.subr.bf16.mxu0 0
    %2062 = vmatpush1.bf16.msra.mxu0 0
    %2063 = vmatprep.subr.bf16.mxu0 0
    %2064 = vmatpush1.bf16.msra.mxu0 0
    %2065 = vmatprep.mubr.bf16.mxu0 0
    %2066 = vmatmul.mubr.bf16.gmra.mrb[0].mxu0 %v2031
    %v2067 = vpop.f32.mrb[0].mxu0
    %v2068 = vadd.f32 0.0, %v2067
    %v2069 = vpop.f32.mrb[0].mxu0
    %v2070 = vadd.f32 0.0, %v2069
    %v2071 = vpop.f32.mrb[0].mxu0
    %v2072 = vadd.f32 0.0, %v2071
    %v2073 = vpop.f32.mrb[0].mxu0
    %v2074 = vadd.f32 0.0, %v2073
    %2075 = vdwg.mxu0
    %2076 = vst [vmem:[#allocation2] sm:$0xff] %v2068
    %2077 = vst [vmem:[#allocation2 + $0x8] sm:$0xff] %v2070
    %2078 = vst [vmem:[#allocation2 + $0x10] sm:$0xff] %v2072
    %2079 = vst [vmem:[#allocation2 + $0x18] sm:$0xff] %v2074
    // Predicated region
    $region38: #{forward.1} parent=1 // pred_check
      _
    $region39: #{forward.1} parent=1 // pred_check_branch
      %2081 = sbr.rel (0) target = $region41
    $region40: #{forward.1} parent=1 // pred_region
      %s2083 = ssub.s32 512, 512
      %2084 = vsyncadd [#allocation3], %s2083
      %s2085 = sshll.u32 [#allocation2], 4
      %s2086 = int_to_ptr.vmem [resolvable:$true] %s2085
      %2091 = dma.vmem_to_hbm [thread:$0]  %s2086, 512, %s9, [#allocation3], 256, 256, 16
    $region41: #{forward.1} parent=1 // pred_fallthru
      _
    // Predicated region
    $region42: #{forward.1} parent=1 // pred_check
      _
    $region43: #{forward.1} parent=1 // pred_check_branch
      %2093 = sbr.rel (0) target = $region45
    $region44: #{forward.1} parent=1 // pred_region
      %2094 = dma.done [#allocation3], 512
    $region45: #{forward.1} parent=1 // pred_fallthru
      _
    %2095 = vsyncpa [#allocation3], 1

</llo_original>
